<compile_context>
chip_gen: v6e
topology: v6e:2x2x1
jax: 0.10.0
libtpu: 0.0.40
codegen_flags: <defaults>
</compile_context>

<pallas_src>
import functools

import jax
import jax.numpy as jnp
from jax.experimental import pallas as pl
from jax.experimental.pallas import tpu as pltpu

EPS = 1e-5


def bn_conv_relu_kernel(x_ref, scale_ref, shift_ref, w_ref, b_ref, o_ref, col_ref):
    """One (batch, row-tile) step: affine-BN -> im2col -> matmul -> bias -> ReLU.

    x_ref:     (TH+2, W+2, Cin)  raw input tile with 1-pixel halo (zeros at the
                                 true image border, real neighbor rows inside)
    scale_ref: (1, 1, Cin)       gamma * rsqrt(var + eps)
    shift_ref: (1, 1, Cin)       beta - mean * scale
    w_ref:     (9*Cin, Cout)     conv weights, tap-major (ky, kx, cin), bf16
    b_ref:     (1, Cout)         conv bias
    o_ref:     (TH, W, Cout)     output tile
    col_ref:   (TH*W, 9*Cin)     im2col scratch (f32, fully overwritten each step)
    """
    THp2, Wp, Cin = x_ref.shape
    TH, W = THp2 - 2, Wp - 2

    t = pl.program_id(1)                  # row-tile index
    last_t = pl.num_programs(1) - 1

    x = x_ref[...]                        # f32

    # ---- BatchNorm affine (stats precomputed in the wrapper) ----------------
    # Conv zero-padding must be zero *after* normalization.  Raw pad pixels are
    # 0, so x*scale is already 0 there; only `shift` must be suppressed.
    # Column 0 / W+1 are always padding; row 0 / TH+1 are padding only for the
    # first / last row-tile (interior halos carry real neighbor rows).
    row = jax.lax.broadcasted_iota(jnp.int32, (THp2, Wp, 1), 0)
    col = jax.lax.broadcasted_iota(jnp.int32, (THp2, Wp, 1), 1)
    valid = (col >= 1) & (col <= W)
    valid = valid & ((row >= 1) | (t > 0))
    valid = valid & ((row <= TH) | (t < last_t))
    xn = x * scale_ref[...] + jnp.where(valid, shift_ref[...], 0.0)   # f32 VPU

    # ---- im2col into VMEM scratch: 9 shifted slices -> (TH*W, 9*Cin) --------
    for ky in range(3):
        for kx in range(3):
            tap = ky * 3 + kx
            col_ref[:, tap * Cin:(tap + 1) * Cin] = (
                xn[ky:ky + TH, kx:kx + W, :].reshape(TH * W, Cin))

    # ---- single MXU matmul: bf16 operands, f32 accumulation -----------------
    acc = jnp.dot(col_ref[...].astype(jnp.bfloat16), w_ref[...],
                  preferred_element_type=jnp.float32)        # (TH*W, Cout)

    out = jnp.maximum(acc + b_ref[...], 0.0)                 # bias + ReLU (f32)
    o_ref[...] = out.reshape(TH, W, Cout := b_ref.shape[-1]).astype(o_ref.dtype)


@functools.partial(jax.jit, static_argnames=("tile_h",))
def bn_relu_3x3(x_nchw, gamma, beta, w_oihw, bias, *, tile_h=8):
    """x_nchw: (N, Cin, H, W); returns (N, Cout, H, W) float32."""
    N, C, H, W = x_nchw.shape
    Cout = w_oihw.shape[0]
    TH = tile_h if H % tile_h == 0 else H   # row-tile height
    n_h = H // TH

    # TODO(synk): keep activations NHWC end-to-end (and use a halo DMA /
    # pl.Element-indexed spec for very large H) to avoid the wrapper-side
    # transposes and the duplicated halo rows.
    x_nhwc = jnp.transpose(x_nchw, (0, 2, 3, 1)).astype(jnp.float32)

    # ---- Pass 1: batch statistics -> per-channel (scale, shift) -------------
    mean = jnp.mean(x_nhwc, axis=(0, 1, 2))
    var = jnp.mean(jnp.square(x_nhwc - mean[None, None, None, :]), axis=(0, 1, 2))
    scale = gamma.astype(jnp.float32) * jax.lax.rsqrt(var + EPS)
    shift = beta.astype(jnp.float32) - mean * scale

    # ---- SAME padding + overlapping row windows (1-row halo each side) ------
    xpad = jnp.pad(x_nhwc, ((0, 0), (1, 1), (1, 1), (0, 0)))
    x_win = jnp.stack([xpad[:, t * TH:t * TH + TH + 2] for t in range(n_h)],
                      axis=1)                     # (N, n_h, TH+2, W+2, C)

    # Conv weights as an im2col matrix (tap-major ky,kx,cin), bf16 for the MXU.
    w2d = jnp.transpose(w_oihw, (2, 3, 1, 0)).astype(jnp.float32)    # HWIO
    w2d = w2d.reshape(9 * C, Cout).astype(jnp.bfloat16)
    scale3 = scale.reshape(1, 1, C)
    shift3 = shift.reshape(1, 1, C)
    bias2 = bias.reshape(1, Cout).astype(jnp.float32)

    flops = 2 * N * H * W * 9 * C * Cout
    bytes_accessed = (x_win.size + N * H * W * Cout) * 4 + w2d.size * 2

    # Per-step VMEM: input tile + im2col scratch + output tile (+ 2x buffering)
    # is a few hundred KiB at realistic tiles -> comfortably under the 32 MiB
    # scoped default (and v7x's 64 MiB physical VMEM).
    out = pl.pallas_call(
        bn_conv_relu_kernel,
        out_shape=jax.ShapeDtypeStruct((N, n_h, TH, W, Cout), jnp.float32),
        grid=(N, n_h),
        in_specs=[
            pl.BlockSpec((None, None, TH + 2, W + 2, C),
                         lambda n, t: (n, t, 0, 0, 0)),
            pl.BlockSpec((1, 1, C), lambda n, t: (0, 0, 0)),
            pl.BlockSpec((1, 1, C), lambda n, t: (0, 0, 0)),
            pl.BlockSpec((9 * C, Cout), lambda n, t: (0, 0)),
            pl.BlockSpec((1, Cout), lambda n, t: (0, 0)),
        ],
        out_specs=pl.BlockSpec((None, None, TH, W, Cout),
                               lambda n, t: (n, t, 0, 0, 0)),
        scratch_shapes=[pltpu.VMEM((TH * W, 9 * C), jnp.float32)],
        compiler_params=pltpu.CompilerParams(
            dimension_semantics=("parallel", "parallel"),
            vmem_limit_bytes=32 * 1024 * 1024),
        cost_estimate=pl.CostEstimate(
            flops=flops, transcendentals=0, bytes_accessed=bytes_accessed),
    )(x_win, scale3, shift3, w2d, bias2)

    # TODO(synk): for tiny Cout, pack W*Cout into the output minor dim inside
    # the kernel for fully lane-dense stores; at production channel counts
    # (Cout >= 128) the current layout is already lane-dense.
    out_nhwc = out.reshape(N, H, W, Cout)
    return jnp.transpose(out_nhwc, (0, 3, 1, 2))


def reference(x_nchw, gamma, beta, w_oihw, bias):
    """Pure-JAX reference mirroring PyTorch training-mode BN -> conv -> relu."""
    mean = x_nchw.mean(axis=(0, 2, 3), keepdims=True)
    var = ((x_nchw - mean) ** 2).mean(axis=(0, 2, 3), keepdims=True)
    xn = (x_nchw - mean) / jnp.sqrt(var + EPS)
    xn = xn * gamma[None, :, None, None] + beta[None, :, None, None]
    y = jax.lax.conv_general_dilated(
        xn, w_oihw, window_strides=(1, 1), padding="SAME",
        dimension_numbers=("NCHW", "OIHW", "NCHW"))
    y = y + bias[None, :, None, None]
    return jnp.maximum(y, 0.0)


if __name__ == "__main__":
    N, Cin, Cout, H, W = 2, 4, 8, 16, 16

    key = jax.random.PRNGKey(0)
    kx, kw, kb, kg, kbt = jax.random.split(key, 5)

    x = jax.random.normal(kx, (N, Cin, H, W), jnp.float32)

    # Deterministic parameter init (PyTorch BN default: gamma=1, beta=0).
    gamma = jnp.ones((Cin,), jnp.float32)
    beta = jnp.zeros((Cin,), jnp.float32)
    fan_in = Cin * 3 * 3
    bound = 1.0 / (fan_in ** 0.5)
    w = jax.random.uniform(kw, (Cout, Cin, 3, 3), jnp.float32, -bound, bound)
    b = jax.random.uniform(kb, (Cout,), jnp.float32, -bound, bound)

    out = bn_relu_3x3(x, gamma, beta, w, b)
    out = jax.block_until_ready(out)

    ref = reference(x, gamma, beta, w, b)
    assert out.shape == (N, Cout, H, W), out.shape
    # bf16 MXU operands -> looser tolerance than pure-f32.
    assert jnp.allclose(out, ref, atol=5e-2, rtol=5e-2), float(
        jnp.max(jnp.abs(out - ref)))

    print("KERNEL_OK")
</pallas_src>

<mosaic_0001>
module attributes {stable_mosaic.version = 11 : i64} {
  func.func @bn_conv_relu_kernel(%arg0: i32, %arg1: i32, %arg2: memref<1x1x10x18x4xf32, #tpu.memory_space<vmem>>, %arg3: memref<1x1x4xf32, #tpu.memory_space<vmem>>, %arg4: memref<1x1x4xf32, #tpu.memory_space<vmem>>, %arg5: memref<36x8xbf16, #tpu.memory_space<vmem>>, %arg6: memref<1x8xf32, #tpu.memory_space<vmem>>, %arg7: memref<1x1x8x16x8xf32, #tpu.memory_space<vmem>>, %arg8: memref<128x36xf32, #tpu.memory_space<vmem>>) attributes {dimension_semantics = [#tpu.dimension_semantics<parallel>, #tpu.dimension_semantics<parallel>], iteration_bounds = array<i64: 2, 2>, scalar_prefetch = 0 : i64, scratch_operands = 1 : i64, tpu.core_type = #tpu.core_type<tc>, window_params = [{transform_indices = @transform_0, window_bounds = array<i64: 1, 1, 10, 18, 4>}, {pipeline_mode = #tpu.pipeline_mode<synchronous>, transform_indices = @transform_1, window_bounds = array<i64: 1, 1, 4>}, {pipeline_mode = #tpu.pipeline_mode<synchronous>, transform_indices = @transform_2, window_bounds = array<i64: 1, 1, 4>}, {pipeline_mode = #tpu.pipeline_mode<synchronous>, transform_indices = @transform_3, window_bounds = array<i64: 36, 8>}, {pipeline_mode = #tpu.pipeline_mode<synchronous>, transform_indices = @transform_4, window_bounds = array<i64: 1, 8>}, {transform_indices = @transform_5, window_bounds = array<i64: 1, 1, 8, 16, 8>}]} {
    %c0 = arith.constant 0 : index
    %c0_0 = arith.constant 0 : index
    %c0_1 = arith.constant 0 : index
    %c0_2 = arith.constant 0 : index
    %c0_3 = arith.constant 0 : index
    %0 = vector.load %arg2[%c0, %c0_0, %c0_1, %c0_2, %c0_3] : memref<1x1x10x18x4xf32, #tpu.memory_space<vmem>>, vector<1x1x10x18x4xf32>
    %1 = vector.shape_cast %0 : vector<1x1x10x18x4xf32> to vector<10x18x4xf32>
    %2 = tpu.iota {dimensions = array<i32: 0>} : vector<10x18x1xi32>
    %3 = tpu.iota {dimensions = array<i32: 1>} : vector<10x18x1xi32>
    %c1_i32 = arith.constant 1 : i32
    %4 = vector.broadcast %c1_i32 : i32 to vector<10x18x1xi32>
    %5 = arith.cmpi sge, %3, %4 : vector<10x18x1xi32>
    %c16_i32 = arith.constant 16 : i32
    %6 = vector.broadcast %c16_i32 : i32 to vector<10x18x1xi32>
    %7 = arith.cmpi sle, %3, %6 : vector<10x18x1xi32>
    %8 = arith.andi %5, %7 : vector<10x18x1xi1>
    %c1_i32_4 = arith.constant 1 : i32
    %9 = vector.broadcast %c1_i32_4 : i32 to vector<10x18x1xi32>
    %10 = arith.cmpi sge, %2, %9 : vector<10x18x1xi32>
    %c0_i32 = arith.constant 0 : i32
    %11 = arith.cmpi sgt, %arg1, %c0_i32 : i32
    %12 = vector.broadcast %11 : i1 to vector<10x18x1xi1>
    %13 = arith.ori %10, %12 : vector<10x18x1xi1>
    %14 = arith.andi %8, %13 : vector<10x18x1xi1>
    %c8_i32 = arith.constant 8 : i32
    %15 = vector.broadcast %c8_i32 : i32 to vector<10x18x1xi32>
    %16 = arith.cmpi sle, %2, %15 : vector<10x18x1xi32>
    %c1_i32_5 = arith.constant 1 : i32
    %17 = arith.cmpi slt, %arg1, %c1_i32_5 : i32
    %18 = vector.broadcast %17 : i1 to vector<10x18x1xi1>
    %19 = arith.ori %16, %18 : vector<10x18x1xi1>
    %20 = arith.andi %14, %19 : vector<10x18x1xi1>
    %c0_6 = arith.constant 0 : index
    %c0_7 = arith.constant 0 : index
    %c0_8 = arith.constant 0 : index
    %21 = vector.load %arg3[%c0_6, %c0_7, %c0_8] : memref<1x1x4xf32, #tpu.memory_space<vmem>>, vector<1x1x4xf32>
    %22 = vector.broadcast %21 : vector<1x1x4xf32> to vector<10x18x4xf32>
    %23 = arith.mulf %1, %22 : vector<10x18x4xf32>
    %c0_9 = arith.constant 0 : index
    %c0_10 = arith.constant 0 : index
    %c0_11 = arith.constant 0 : index
    %24 = vector.load %arg4[%c0_9, %c0_10, %c0_11] : memref<1x1x4xf32, #tpu.memory_space<vmem>>, vector<1x1x4xf32>
    %cst = arith.constant 0.000000e+00 : f32
    %25 = vector.shape_cast %20 : vector<10x18x1xi1> to vector<10x18x1xi1>
    %26 = vector.broadcast %25 : vector<10x18x1xi1> to vector<10x18x4xi1>
    %27 = vector.shape_cast %24 : vector<1x1x4xf32> to vector<1x1x4xf32>
    %28 = vector.broadcast %27 : vector<1x1x4xf32> to vector<10x18x4xf32>
    %29 = vector.broadcast %cst : f32 to vector<10x18x4xf32>
    %30 = arith.select %26, %28, %29 : vector<10x18x4xi1>, vector<10x18x4xf32>
    %31 = arith.addf %23, %30 : vector<10x18x4xf32>
    %32 = vector.extract_strided_slice %31 {offsets = [0, 0, 0], sizes = [8, 16, 4], strides = [1, 1, 1]} : vector<10x18x4xf32> to vector<8x16x4xf32>
    %33 = vector.shape_cast %32 : vector<8x16x4xf32> to vector<128x4xf32>
    %c0_12 = arith.constant 0 : index
    %c0_13 = arith.constant 0 : index
    %34 = vector.load %arg8[%c0_12, %c0_13] : memref<128x36xf32, #tpu.memory_space<vmem>>, vector<128x4xf32>
    tpu.vector_store %arg8[%c0_12, %c0_13], %33 {strides = array<i32>} : memref<128x36xf32, #tpu.memory_space<vmem>>, vector<128x4xf32>,
    %35 = vector.extract_strided_slice %31 {offsets = [0, 1, 0], sizes = [8, 16, 4], strides = [1, 1, 1]} : vector<10x18x4xf32> to vector<8x16x4xf32>
    %36 = vector.shape_cast %35 : vector<8x16x4xf32> to vector<128x4xf32>
    %c0_14 = arith.constant 0 : index
    %c4 = arith.constant 4 : index
    %37 = vector.load %arg8[%c0_14, %c4] : memref<128x36xf32, #tpu.memory_space<vmem>>, vector<128x4xf32>
    tpu.vector_store %arg8[%c0_14, %c4], %36 {strides = array<i32>} : memref<128x36xf32, #tpu.memory_space<vmem>>, vector<128x4xf32>,
    %38 = vector.extract_strided_slice %31 {offsets = [0, 2, 0], sizes = [8, 16, 4], strides = [1, 1, 1]} : vector<10x18x4xf32> to vector<8x16x4xf32>
    %39 = vector.shape_cast %38 : vector<8x16x4xf32> to vector<128x4xf32>
    %c0_15 = arith.constant 0 : index
    %c8 = arith.constant 8 : index
    %40 = vector.load %arg8[%c0_15, %c8] : memref<128x36xf32, #tpu.memory_space<vmem>>, vector<128x4xf32>
    tpu.vector_store %arg8[%c0_15, %c8], %39 {strides = array<i32>} : memref<128x36xf32, #tpu.memory_space<vmem>>, vector<128x4xf32>,
    %41 = vector.extract_strided_slice %31 {offsets = [1, 0, 0], sizes = [8, 16, 4], strides = [1, 1, 1]} : vector<10x18x4xf32> to vector<8x16x4xf32>
    %42 = vector.shape_cast %41 : vector<8x16x4xf32> to vector<128x4xf32>
    %c0_16 = arith.constant 0 : index
    %c12 = arith.constant 12 : index
    %43 = vector.load %arg8[%c0_16, %c12] : memref<128x36xf32, #tpu.memory_space<vmem>>, vector<128x4xf32>
    tpu.vector_store %arg8[%c0_16, %c12], %42 {strides = array<i32>} : memref<128x36xf32, #tpu.memory_space<vmem>>, vector<128x4xf32>,
    %44 = vector.extract_strided_slice %31 {offsets = [1, 1, 0], sizes = [8, 16, 4], strides = [1, 1, 1]} : vector<10x18x4xf32> to vector<8x16x4xf32>
    %45 = vector.shape_cast %44 : vector<8x16x4xf32> to vector<128x4xf32>
    %c0_17 = arith.constant 0 : index
    %c16 = arith.constant 16 : index
    %46 = vector.load %arg8[%c0_17, %c16] : memref<128x36xf32, #tpu.memory_space<vmem>>, vector<128x4xf32>
    tpu.vector_store %arg8[%c0_17, %c16], %45 {strides = array<i32>} : memref<128x36xf32, #tpu.memory_space<vmem>>, vector<128x4xf32>,
    %47 = vector.extract_strided_slice %31 {offsets = [1, 2, 0], sizes = [8, 16, 4], strides = [1, 1, 1]} : vector<10x18x4xf32> to vector<8x16x4xf32>
    %48 = vector.shape_cast %47 : vector<8x16x4xf32> to vector<128x4xf32>
    %c0_18 = arith.constant 0 : index
    %c20 = arith.constant 20 : index
    %49 = vector.load %arg8[%c0_18, %c20] : memref<128x36xf32, #tpu.memory_space<vmem>>, vector<128x4xf32>
    tpu.vector_store %arg8[%c0_18, %c20], %48 {strides = array<i32>} : memref<128x36xf32, #tpu.memory_space<vmem>>, vector<128x4xf32>,
    %50 = vector.extract_strided_slice %31 {offsets = [2, 0, 0], sizes = [8, 16, 4], strides = [1, 1, 1]} : vector<10x18x4xf32> to vector<8x16x4xf32>
    %51 = vector.shape_cast %50 : vector<8x16x4xf32> to vector<128x4xf32>
    %c0_19 = arith.constant 0 : index
    %c24 = arith.constant 24 : index
    %52 = vector.load %arg8[%c0_19, %c24] : memref<128x36xf32, #tpu.memory_space<vmem>>, vector<128x4xf32>
    tpu.vector_store %arg8[%c0_19, %c24], %51 {strides = array<i32>} : memref<128x36xf32, #tpu.memory_space<vmem>>, vector<128x4xf32>,
    %53 = vector.extract_strided_slice %31 {offsets = [2, 1, 0], sizes = [8, 16, 4], strides = [1, 1, 1]} : vector<10x18x4xf32> to vector<8x16x4xf32>
    %54 = vector.shape_cast %53 : vector<8x16x4xf32> to vector<128x4xf32>
    %c0_20 = arith.constant 0 : index
    %c28 = arith.constant 28 : index
    %55 = vector.load %arg8[%c0_20, %c28] : memref<128x36xf32, #tpu.memory_space<vmem>>, vector<128x4xf32>
    tpu.vector_store %arg8[%c0_20, %c28], %54 {strides = array<i32>} : memref<128x36xf32, #tpu.memory_space<vmem>>, vector<128x4xf32>,
    %56 = vector.extract_strided_slice %31 {offsets = [2, 2, 0], sizes = [8, 16, 4], strides = [1, 1, 1]} : vector<10x18x4xf32> to vector<8x16x4xf32>
    %57 = vector.shape_cast %56 : vector<8x16x4xf32> to vector<128x4xf32>
    %c0_21 = arith.constant 0 : index
    %c32 = arith.constant 32 : index
    %58 = vector.load %arg8[%c0_21, %c32] : memref<128x36xf32, #tpu.memory_space<vmem>>, vector<128x4xf32>
    tpu.vector_store %arg8[%c0_21, %c32], %57 {strides = array<i32>} : memref<128x36xf32, #tpu.memory_space<vmem>>, vector<128x4xf32>,
    %c0_22 = arith.constant 0 : index
    %c0_23 = arith.constant 0 : index
    %59 = vector.load %arg8[%c0_22, %c0_23] : memref<128x36xf32, #tpu.memory_space<vmem>>, vector<128x36xf32>
    %60 = arith.truncf %59 : vector<128x36xf32> to vector<128x36xbf16>
    %c0_24 = arith.constant 0 : index
    %c0_25 = arith.constant 0 : index
    %61 = vector.load %arg5[%c0_24, %c0_25] : memref<36x8xbf16, #tpu.memory_space<vmem>>, vector<36x8xbf16>
    %cst_26 = arith.constant dense<0.000000e+00> : vector<128x8xf32>
    %62 = tpu.matmul %60, %61, %cst_26 {dimension_numbers = #tpu.dot_dimension_numbers<[1], [0], [0], [1], [0, 0, 1, 1], [], []>} : vector<128x36xbf16>, vector<36x8xbf16>, vector<128x8xf32> -> vector<128x8xf32>
    %c0_27 = arith.constant 0 : index
    %c0_28 = arith.constant 0 : index
    %63 = vector.load %arg6[%c0_27, %c0_28] : memref<1x8xf32, #tpu.memory_space<vmem>>, vector<1x8xf32>
    %64 = vector.broadcast %63 : vector<1x8xf32> to vector<128x8xf32>
    %65 = arith.addf %62, %64 : vector<128x8xf32>
    %cst_29 = arith.constant 0.000000e+00 : f32
    %66 = vector.broadcast %cst_29 : f32 to vector<128x8xf32>
    %67 = arith.maximumf %65, %66 : vector<128x8xf32>
    %68 = vector.shape_cast %67 : vector<128x8xf32> to vector<8x16x8xf32>
    %c0_30 = arith.constant 0 : index
    %c0_31 = arith.constant 0 : index
    %c0_32 = arith.constant 0 : index
    %c0_33 = arith.constant 0 : index
    %c0_34 = arith.constant 0 : index
    %69 = vector.load %arg7[%c0_30, %c0_31, %c0_32, %c0_33, %c0_34] : memref<1x1x8x16x8xf32, #tpu.memory_space<vmem>>, vector<1x1x8x16x8xf32>
    %70 = vector.shape_cast %69 : vector<1x1x8x16x8xf32> to vector<8x16x8xf32>
    %71 = vector.shape_cast %68 : vector<8x16x8xf32> to vector<1x1x8x16x8xf32>
    tpu.vector_store %arg7[%c0_30, %c0_31, %c0_32, %c0_33, %c0_34], %71 {strides = array<i32>} : memref<1x1x8x16x8xf32, #tpu.memory_space<vmem>>, vector<1x1x8x16x8xf32>,
    return
  }
  func.func @transform_0(%arg0: i32, %arg1: i32) -> (i32, i32, i32, i32, i32) {
    %c0_i32 = arith.constant 0 : i32
    %c0_i32_0 = arith.constant 0 : i32
    %c0_i32_1 = arith.constant 0 : i32
    %c0_i32_2 = arith.constant 0 : i32
    return %arg0, %arg1, %c0_i32, %c0_i32_0, %c0_i32_1 : i32, i32, i32, i32, i32
  }
  func.func @transform_1(%arg0: i32, %arg1: i32) -> (i32, i32, i32) {
    %c0_i32 = arith.constant 0 : i32
    %c0_i32_0 = arith.constant 0 : i32
    %c0_i32_1 = arith.constant 0 : i32
    %c0_i32_2 = arith.constant 0 : i32
    return %c0_i32, %c0_i32_0, %c0_i32_1 : i32, i32, i32
  }
  func.func @transform_2(%arg0: i32, %arg1: i32) -> (i32, i32, i32) {
    %c0_i32 = arith.constant 0 : i32
    %c0_i32_0 = arith.constant 0 : i32
    %c0_i32_1 = arith.constant 0 : i32
    %c0_i32_2 = arith.constant 0 : i32
    return %c0_i32, %c0_i32_0, %c0_i32_1 : i32, i32, i32
  }
  func.func @transform_3(%arg0: i32, %arg1: i32) -> (i32, i32) {
    %c0_i32 = arith.constant 0 : i32
    %c0_i32_0 = arith.constant 0 : i32
    %c0_i32_1 = arith.constant 0 : i32
    return %c0_i32, %c0_i32_0 : i32, i32
  }
  func.func @transform_4(%arg0: i32, %arg1: i32) -> (i32, i32) {
    %c0_i32 = arith.constant 0 : i32
    %c0_i32_0 = arith.constant 0 : i32
    %c0_i32_1 = arith.constant 0 : i32
    return %c0_i32, %c0_i32_0 : i32, i32
  }
  func.func @transform_5(%arg0: i32, %arg1: i32) -> (i32, i32, i32, i32, i32) {
    %c0_i32 = arith.constant 0 : i32
    %c0_i32_0 = arith.constant 0 : i32
    %c0_i32_1 = arith.constant 0 : i32
    %c0_i32_2 = arith.constant 0 : i32
    return %arg0, %arg1, %c0_i32, %c0_i32_0, %c0_i32_1 : i32, i32, i32, i32, i32
  }
}

</mosaic_0001>

<llo_original>
// kernel: bn_relu_3x3.1
$region0: #{bn_relu_3x3.1}
  #allocation0 [shape = 'u32[]', space=smem, size = 0x4, offset = 0x4, fixed_abs, tag = 'smem constant byte address 0x4 - core index']
  #allocation1 [shape = 'u32[144,128]{1,0:T(1,128)}', space=vmem, size = 0x12000, scoped, tag = 'internal scratch']
  #allocation2 [shape = 'f32[128,36]{1,0:T(8,128)}', space=vmem, size = 0x10000, scoped, tag = 'scratch operand']
  %s0 = inlined_call_operand.vmem [shape: f32[2,2,10,18,4], index: 0, kind: input, shape index: {}]
  %s1 = inlined_call_operand.vmem [shape: f32[1,1,4], index: 1, kind: input, shape index: {}]
  %s2 = inlined_call_operand.vmem [shape: f32[1,1,4], index: 2, kind: input, shape index: {}]
  %s3 = inlined_call_operand.vmem [shape: bf16[36,8], index: 3, kind: input, shape index: {}]
  %s4 = inlined_call_operand.vmem [shape: f32[1,8], index: 4, kind: input, shape index: {}]
  %s5 = inlined_call_operand.vmem [shape: f32[2,2,8,16,8], index: 5, kind: output, shape index: {}]
  %s6 = sld [smem:[#allocation0]]
  $region53: #{bn_relu_3x3.1} parent=0
    _
  %s8 = ssub.s32 1, %s6
  %s9 = scalar_select 0, %s8, %s6
  loop: start=0, step=1, limit=6
  $region2: #{bn_relu_3x3.1} parent=0 // loop_pre_header
    _
  $region3: #{bn_relu_3x3.1} parent=0 // loop_header
    %s11 = sphi 0, %s15
    %p12 = scmp.ge.s32.totalorder %s11, 6
    %s18 = sphi 0, %s30
    %s19 = sphi 0, %s26
    %s20 = sphi 0, %s18
    %s21 = sphi 0, %s19
    %s22 = sphi 0, %s20
    %s23 = sphi 0, %s21
    %s35 = sphi 0, %s37
    %s38 = sphi 0, %s35
    %s39 = sphi 0, %s38
    %s55 = sphi 0, %s39
    %s59 = sphi 0, %s59
    %s61 = sphi 0, %s59
    %s62 = sphi 0, %s61
    %s76 = sphi 0, %s62
    %s80 = sphi 0, %s80
    %s82 = sphi 0, %s80
    %s83 = sphi 0, %s82
    %s97 = sphi 0, %s83
    %s101 = sphi 0, %s101
    %s103 = sphi 0, %s101
    %s104 = sphi 0, %s103
    %s118 = sphi 0, %s104
    %s122 = sphi 0, %s122
    %s124 = sphi 0, %s122
    %s125 = sphi 0, %s124
    %s139 = sphi 0, %s125
    %s147 = sphi 0, %s149
    %s150 = sphi 0, %s147
    %s151 = sphi 0, %s150
    %s167 = sphi 0, %s151
  $region4: #{bn_relu_3x3.1} parent=0 // loop_header_branch
    %14 = sbr.rel (%p12) target = $region8
  $region5: #{bn_relu_3x3.1} parent=0 // loop_body
    %s16 = ssub.s32 %s11, 1
    %s17 = ssub.s32 %s11, 2
    %s24 = sadd.s32 1, %s19
    %p25 = scmp.ge.s32.totalorder %s24, 2
    %s26 = scalar_select %p25, 0, %s24
    %s27 = sadd.s32 1, %s18
    %s28 = scalar_select %p25, %s27, %s18
    %p29 = scmp.ge.s32.totalorder %s28, 2
    %s30 = scalar_select %p29, 0, %s28
    %s31 = ssub.s32 %s18, %s30
    %s32 = ssub.s32 %s19, %s26
    %s33 = sor.u32 %s31, %s32
    %p34 = scmp.eq.s32.totalorder %s33, 0
    %s36 = sadd.s32 %s35, 1
    %s37 = scalar_select %p34, %s35, %s36
    %p40 = pneg %p34
    %p41 = scmp.eq.s32.totalorder %s11, 3
    %p42 = por %p40, %p41
    %p43 = scmp.ne.s32.totalorder %s35, %s38
    %p44 = scmp.eq.s32.totalorder %s11, 0
    %p45 = por %p43, %p44
    %p46 = scmp.ne.s32.totalorder %s35, %s38
    %p47 = scmp.eq.s32.totalorder %s16, 3
    %p48 = por %p46, %p47
    %p49 = scmp.ne.s32.totalorder %s38, %s39
    %p50 = scmp.eq.s32.totalorder %s16, 0
    %p51 = por %p49, %p50
    %p52 = scmp.ne.s32.totalorder %s38, %s39
    %p53 = scmp.eq.s32.totalorder %s17, 3
    %p54 = por %p52, %p53
    %p56 = scmp.ne.s32.totalorder %s39, %s55
    %p57 = scmp.eq.s32.totalorder %s17, 0
    %p58 = por %p56, %p57
    %s60 = sadd.s32 %s59, 1
    %p63 = scmp.eq.s32.totalorder %s11, 3
    %p64 = scmp.ne.s32.totalorder %s59, %s61
    %p65 = scmp.eq.s32.totalorder %s11, 0
    %p66 = por %p64, %p65
    %p67 = scmp.ne.s32.totalorder %s59, %s61
    %p68 = scmp.eq.s32.totalorder %s16, 3
    %p69 = por %p67, %p68
    %p70 = scmp.ne.s32.totalorder %s61, %s62
    %p71 = scmp.eq.s32.totalorder %s16, 0
    %p72 = por %p70, %p71
    %p73 = scmp.ne.s32.totalorder %s61, %s62
    %p74 = scmp.eq.s32.totalorder %s17, 3
    %p75 = por %p73, %p74
    %p77 = scmp.ne.s32.totalorder %s62, %s76
    %p78 = scmp.eq.s32.totalorder %s17, 0
    %p79 = por %p77, %p78
    %s81 = sadd.s32 %s80, 1
    %p84 = scmp.eq.s32.totalorder %s11, 3
    %p85 = scmp.ne.s32.totalorder %s80, %s82
    %p86 = scmp.eq.s32.totalorder %s11, 0
    %p87 = por %p85, %p86
    %p88 = scmp.ne.s32.totalorder %s80, %s82
    %p89 = scmp.eq.s32.totalorder %s16, 3
    %p90 = por %p88, %p89
    %p91 = scmp.ne.s32.totalorder %s82, %s83
    %p92 = scmp.eq.s32.totalorder %s16, 0
    %p93 = por %p91, %p92
    %p94 = scmp.ne.s32.totalorder %s82, %s83
    %p95 = scmp.eq.s32.totalorder %s17, 3
    %p96 = por %p94, %p95
    %p98 = scmp.ne.s32.totalorder %s83, %s97
    %p99 = scmp.eq.s32.totalorder %s17, 0
    %p100 = por %p98, %p99
    %s102 = sadd.s32 %s101, 1
    %p105 = scmp.eq.s32.totalorder %s11, 3
    %p106 = scmp.ne.s32.totalorder %s101, %s103
    %p107 = scmp.eq.s32.totalorder %s11, 0
    %p108 = por %p106, %p107
    %p109 = scmp.ne.s32.totalorder %s101, %s103
    %p110 = scmp.eq.s32.totalorder %s16, 3
    %p111 = por %p109, %p110
    %p112 = scmp.ne.s32.totalorder %s103, %s104
    %p113 = scmp.eq.s32.totalorder %s16, 0
    %p114 = por %p112, %p113
    %p115 = scmp.ne.s32.totalorder %s103, %s104
    %p116 = scmp.eq.s32.totalorder %s17, 3
    %p117 = por %p115, %p116
    %p119 = scmp.ne.s32.totalorder %s104, %s118
    %p120 = scmp.eq.s32.totalorder %s17, 0
    %p121 = por %p119, %p120
    %s123 = sadd.s32 %s122, 1
    %p126 = scmp.eq.s32.totalorder %s11, 3
    %p127 = scmp.ne.s32.totalorder %s122, %s124
    %p128 = scmp.eq.s32.totalorder %s11, 0
    %p129 = por %p127, %p128
    %p130 = scmp.ne.s32.totalorder %s122, %s124
    %p131 = scmp.eq.s32.totalorder %s16, 3
    %p132 = por %p130, %p131
    %p133 = scmp.ne.s32.totalorder %s124, %s125
    %p134 = scmp.eq.s32.totalorder %s16, 0
    %p135 = por %p133, %p134
    %p136 = scmp.ne.s32.totalorder %s124, %s125
    %p137 = scmp.eq.s32.totalorder %s17, 3
    %p138 = por %p136, %p137
    %p140 = scmp.ne.s32.totalorder %s125, %s139
    %p141 = scmp.eq.s32.totalorder %s17, 0
    %p142 = por %p140, %p141
    %s143 = ssub.s32 %s18, %s30
    %s144 = ssub.s32 %s19, %s26
    %s145 = sor.u32 %s143, %s144
    %p146 = scmp.eq.s32.totalorder %s145, 0
    %s148 = sadd.s32 %s147, 1
    %s149 = scalar_select %p146, %s147, %s148
    %p152 = pneg %p146
    %p153 = scmp.eq.s32.totalorder %s11, 3
    %p154 = por %p152, %p153
    %p155 = scmp.ne.s32.totalorder %s147, %s150
    %p156 = scmp.eq.s32.totalorder %s11, 0
    %p157 = por %p155, %p156
    %p158 = scmp.ne.s32.totalorder %s147, %s150
    %p159 = scmp.eq.s32.totalorder %s16, 3
    %p160 = por %p158, %p159
    %p161 = scmp.ne.s32.totalorder %s150, %s151
    %p162 = scmp.eq.s32.totalorder %s16, 0
    %p163 = por %p161, %p162
    %p164 = scmp.ne.s32.totalorder %s150, %s151
    %p165 = scmp.eq.s32.totalorder %s17, 3
    %p166 = por %p164, %p165
    %p168 = scmp.ne.s32.totalorder %s151, %s167
    %p169 = scmp.eq.s32.totalorder %s17, 0
    %p170 = por %p168, %p169
    %p171 = scmp.le.s32.totalorder 1, %s11
    %p172 = scmp.lt.s32.totalorder %s11, 5
    %p173 = pnand %p171, %p172
    %p174 = pneg %p173
    // Predicated region
    $region9: #{bn_relu_3x3.1} parent=5 // pred_check
      _
    $region10: #{bn_relu_3x3.1} parent=5 // pred_check_branch
      %176 = sbr.rel (%p173) target = $region12
    $region11: #{bn_relu_3x3.1} parent=5 // pred_region
      %s177 = ssub.s32 %s11, 1
      // Predicated region
      $region13: #{bn_relu_3x3.1} parent=11 // pred_check
        %p178 = pneg %p72
      $region14: #{bn_relu_3x3.1} parent=11 // pred_check_branch
        %180 = sbr.rel (%p178) target = $region16
      $region15: #{bn_relu_3x3.1} parent=11 // pred_region
        _
      $region16: #{bn_relu_3x3.1} parent=11 // pred_fallthru
        _
      // Predicated region
      $region17: #{bn_relu_3x3.1} parent=11 // pred_check
        %p181 = pneg %p93
      $region18: #{bn_relu_3x3.1} parent=11 // pred_check_branch
        %183 = sbr.rel (%p181) target = $region20
      $region19: #{bn_relu_3x3.1} parent=11 // pred_region
        _
      $region20: #{bn_relu_3x3.1} parent=11 // pred_fallthru
        _
      // Predicated region
      $region21: #{bn_relu_3x3.1} parent=11 // pred_check
        %p184 = pneg %p114
      $region22: #{bn_relu_3x3.1} parent=11 // pred_check_branch
        %186 = sbr.rel (%p184) target = $region24
      $region23: #{bn_relu_3x3.1} parent=11 // pred_region
        _
      $region24: #{bn_relu_3x3.1} parent=11 // pred_fallthru
        _
      // Predicated region
      $region25: #{bn_relu_3x3.1} parent=11 // pred_check
        %p187 = pneg %p135
      $region26: #{bn_relu_3x3.1} parent=11 // pred_check_branch
        %189 = sbr.rel (%p187) target = $region28
      $region27: #{bn_relu_3x3.1} parent=11 // pred_region
        _
      $region28: #{bn_relu_3x3.1} parent=11 // pred_fallthru
        _
    $region12: #{bn_relu_3x3.1} parent=5 // pred_fallthru
      _
    %p190 = scmp.lt.s32.totalorder %s11, 4
    // Predicated region
    $region29: #{bn_relu_3x3.1} parent=5 // pred_check
      %p191 = pneg %p190
    $region30: #{bn_relu_3x3.1} parent=5 // pred_check_branch
      %193 = sbr.rel (%p191) target = $region32
    $region31: #{bn_relu_3x3.1} parent=5 // pred_region
      // Predicated region
      $region33: #{bn_relu_3x3.1} parent=31 // pred_check
        %p194 = pneg %p45
      $region34: #{bn_relu_3x3.1} parent=31 // pred_check_branch
        %196 = sbr.rel (%p194) target = $region36
      $region35: #{bn_relu_3x3.1} parent=31 // pred_region
        %p197 = scmp.lt.s32.totalorder %s18, 1
        %s198 = scalar_select %p197, %s18, 1
        %p199 = scmp.lt.s32.totalorder %s19, 1
        %s200 = scalar_select %p199, %s19, 1
        %s201 = smul.addr %s200, 30
        %s202 = smul.addr %s198, 60
        %s203 = sadd.s32 %s201, %s202
        %s204 = smul.addr %s203, 8
        %s205 = scalar_lea.vmem %s0, %s204
      $region36: #{bn_relu_3x3.1} parent=31 // pred_fallthru
        _
    $region32: #{bn_relu_3x3.1} parent=5 // pred_fallthru
      _
    %p206 = scmp.le.s32.totalorder 1, %s11
    %p207 = scmp.lt.s32.totalorder %s11, 5
    %p208 = pnand %p206, %p207
    %p209 = pneg %p208
    // Predicated region
    $region37: #{bn_relu_3x3.1} parent=5 // pred_check
      _
    $region38: #{bn_relu_3x3.1} parent=5 // pred_check_branch
      %211 = sbr.rel (%p208) target = $region40
    $region39: #{bn_relu_3x3.1} parent=5 // pred_region
      %s212 = ssub.s32 %s11, 1
      %p213 = scmp.lt.s32.totalorder %s20, 1
      %s214 = scalar_select %p213, %s20, 1
      %p215 = scmp.lt.s32.totalorder %s21, 1
      %s216 = scalar_select %p215, %s21, 1
      %s217 = smul.addr %s216, 30
      %s218 = smul.addr %s214, 60
      %s219 = sadd.s32 %s217, %s218
      %s220 = smul.addr %s219, 8
      %s221 = scalar_lea.vmem %s0, %s220
      %p222 = pneg %p51
      %p223 = pneg %p48
      %p224 = pneg %p72
      %p225 = pneg %p69
      %p226 = pneg %p93
      %p227 = pneg %p90
      %p228 = pneg %p114
      %p229 = pneg %p111
      %p230 = pneg %p135
      %p231 = pneg %p132
      %p232 = pneg %p163
      %p233 = pneg %p160
      %p234 = scmp.lt.s32.totalorder %s20, 1
      %s235 = scalar_select %p234, %s20, 1
      %p236 = scmp.lt.s32.totalorder %s21, 1
      %s237 = scalar_select %p236, %s21, 1
      %s238 = smul.addr %s237, 16
      %s239 = smul.addr %s235, 32
      %s240 = sadd.s32 %s238, %s239
      %s241 = smul.addr %s240, 8
      %s242 = scalar_lea.vmem %s5, %s241
      %p243 = scmp.lt.s32.totalorder %s20, 1
      %s244 = scalar_select %p243, %s20, 1
      %p245 = scmp.lt.s32.totalorder %s21, 1
      %s246 = scalar_select %p245, %s21, 1
      %s247 = smul.addr %s246, 30
      %s248 = smul.addr %s244, 60
      %s249 = sadd.s32 %s247, %s248
      %s250 = smul.addr %s249, 8
      %s251 = scalar_lea.vmem %s0, %s250
      %p252 = scmp.lt.s32.totalorder %s20, 1
      %s253 = scalar_select %p252, %s20, 1
      %p254 = scmp.lt.s32.totalorder %s21, 1
      %s255 = scalar_select %p254, %s21, 1
      %s256 = smul.addr %s255, 16
      %s257 = smul.addr %s253, 32
      %s258 = sadd.s32 %s256, %s257
      %s259 = smul.addr %s258, 8
      %s260 = scalar_lea.vmem %s5, %s259
      %v262 = vld [vmem:[%s251] sm:$0xff]
      %v263 = vld [vmem:[%s251 + $0x8] sm:$0xff]
      %v264 = vld [vmem:[%s251 + $0x10] sm:$0x3]
      %v265 = vld [vmem:[%s251 + $0x18] sm:$0xff]
      %v266 = vld [vmem:[%s251 + $0x20] sm:$0xff]
      %v267 = vld [vmem:[%s251 + $0x28] sm:$0x3]
      %v268 = vld [vmem:[%s251 + $0x30] sm:$0xff]
      %v269 = vld [vmem:[%s251 + $0x38] sm:$0xff]
      %v270 = vld [vmem:[%s251 + $0x40] sm:$0x3]
      %v271 = vld [vmem:[%s251 + $0x48] sm:$0xff]
      %v272 = vld [vmem:[%s251 + $0x50] sm:$0xff]
      %v273 = vld [vmem:[%s251 + $0x58] sm:$0x3]
      %v274 = vld [vmem:[%s251 + $0x60] sm:$0xff]
      %v275 = vld [vmem:[%s251 + $0x68] sm:$0xff]
      %v276 = vld [vmem:[%s251 + $0x70] sm:$0x3]
      %v277 = vld [vmem:[%s251 + $0x78] sm:$0xff]
      %v278 = vld [vmem:[%s251 + $0x80] sm:$0xff]
      %v279 = vld [vmem:[%s251 + $0x88] sm:$0x3]
      %v280 = vld [vmem:[%s251 + $0x90] sm:$0xff]
      %v281 = vld [vmem:[%s251 + $0x98] sm:$0xff]
      %v282 = vld [vmem:[%s251 + $0xa0] sm:$0x3]
      %v283 = vld [vmem:[%s251 + $0xa8] sm:$0xff]
      %v284 = vld [vmem:[%s251 + $0xb0] sm:$0xff]
      %v285 = vld [vmem:[%s251 + $0xb8] sm:$0x3]
      %v286 = vld [vmem:[%s251 + $0xc0] sm:$0xff]
      %v287 = vld [vmem:[%s251 + $0xc8] sm:$0xff]
      %v288 = vld [vmem:[%s251 + $0xd0] sm:$0x3]
      %v289 = vld [vmem:[%s251 + $0xd8] sm:$0xff]
      %v290 = vld [vmem:[%s251 + $0xe0] sm:$0xff]
      %v291 = vld [vmem:[%s251 + $0xe8] sm:$0x3]
      %v292 = vlaneseq
      %v293 = vshrl.u32 %v292, 7
      %v294 = vadd.s32 %v293, 8
      %v295 = vadd.s32 %v293, 16
      %vm296 = vcmp.ge.s32.totalorder %v293, 1
      %vm297 = vcmp.ge.s32.totalorder %v294, 1
      %vm298 = vcmp.ge.s32.totalorder %v295, 1
      %vm299 = vcmp.le.s32.totalorder %v293, 16
      %vm300 = vcmp.le.s32.totalorder %v294, 16
      %vm301 = vcmp.le.s32.totalorder %v295, 16
      %vm302 = vmand %vm296, %vm299
      %vm303 = vmand %vm297, %vm300
      %vm304 = vmand %vm298, %vm301
      %p305 = scmp.gt.s32.totalorder %s21, 0
      %s306 = scalar_select %p305, 1, 0
      %v307 = vstv %s306
      %vm308 = vcmp.eq.s32.totalorder %v307, 1
      %vm309 = vmand %vm302, %vm308
      %vm310 = vmand %vm303, %vm308
      %vm311 = vmand %vm304, %vm308
      %vm312 = vmand %vm302, 1
      %vm313 = vmand %vm303, 1
      %vm314 = vmand %vm304, 1
      %p315 = scmp.lt.s32.totalorder %s21, 1
      %s316 = scalar_select %p315, 1, 0
      %v317 = vstv %s316
      %vm318 = vcmp.eq.s32.totalorder %v317, 1
      %vm319 = vmand %vm309, 1
      %vm320 = vmand %vm310, 1
      %vm321 = vmand %vm311, 1
      %vm322 = vmand %vm312, %vm318
      %vm323 = vmand %vm313, %vm318
      %vm324 = vmand %vm314, %vm318
      %v325 = vld [vmem:[%s1] sm:$0x1]
      %v327 = vlaneseq
      %v328 = vshrl.u32 %v327, 7
      %v329 = vsub.s32 0, %v328
      %v330 = vrot.slane %v325, %v329
      %v332 = vmul.f32 %v262, %v330
      %v333 = vmul.f32 %v263, %v330
      %v334 = vmul.f32 %v264, %v330
      %v335 = vmul.f32 %v265, %v330
      %v336 = vmul.f32 %v266, %v330
      %v337 = vmul.f32 %v267, %v330
      %v338 = vmul.f32 %v268, %v330
      %v339 = vmul.f32 %v269, %v330
      %v340 = vmul.f32 %v270, %v330
      %v341 = vmul.f32 %v271, %v330
      %v342 = vmul.f32 %v272, %v330
      %v343 = vmul.f32 %v273, %v330
      %v344 = vmul.f32 %v274, %v330
      %v345 = vmul.f32 %v275, %v330
      %v346 = vmul.f32 %v276, %v330
      %v347 = vmul.f32 %v277, %v330
      %v348 = vmul.f32 %v278, %v330
      %v349 = vmul.f32 %v279, %v330
      %v350 = vmul.f32 %v280, %v330
      %v351 = vmul.f32 %v281, %v330
      %v352 = vmul.f32 %v282, %v330
      %v353 = vmul.f32 %v283, %v330
      %v354 = vmul.f32 %v284, %v330
      %v355 = vmul.f32 %v285, %v330
      %v356 = vmul.f32 %v286, %v330
      %v357 = vmul.f32 %v287, %v330
      %v358 = vmul.f32 %v288, %v330
      %v359 = vmul.f32 %v289, %v330
      %v360 = vmul.f32 %v290, %v330
      %v361 = vmul.f32 %v291, %v330
      %v362 = vld [vmem:[%s2] sm:$0x1]
      %v363 = vsel %vm319, 1, 0
      %v364 = vsel %vm320, 1, 0
      %v365 = vsel %vm321, 1, 0
      %v366 = vsel %vm312, 1, 0
      %v367 = vsel %vm313, 1, 0
      %v368 = vsel %vm314, 1, 0
      %v369 = vsel %vm322, 1, 0
      %v370 = vsel %vm323, 1, 0
      %v371 = vsel %vm324, 1, 0
      %vm372 = vcmp.eq.s32.totalorder %v363, 1
      %vm373 = vcmp.eq.s32.totalorder %v364, 1
      %vm374 = vcmp.eq.s32.totalorder %v365, 1
      %vm375 = vcmp.eq.s32.totalorder %v366, 1
      %vm376 = vcmp.eq.s32.totalorder %v367, 1
      %vm377 = vcmp.eq.s32.totalorder %v368, 1
      %vm378 = vcmp.eq.s32.totalorder %v369, 1
      %vm379 = vcmp.eq.s32.totalorder %v370, 1
      %vm380 = vcmp.eq.s32.totalorder %v371, 1
      %v382 = vlaneseq
      %v383 = vshrl.u32 %v382, 7
      %v384 = vsub.s32 0, %v383
      %v385 = vrot.slane %v362, %v384
      %v387 = vsel %vm372, %v385, 0.0
      %v388 = vsel %vm373, %v385, 0.0
      %v389 = vsel %vm374, %v385, 0.0
      %v390 = vsel %vm375, %v385, 0.0
      %v391 = vsel %vm376, %v385, 0.0
      %v392 = vsel %vm377, %v385, 0.0
      %v393 = vsel %vm378, %v385, 0.0
      %v394 = vsel %vm379, %v385, 0.0
      %v395 = vsel %vm380, %v385, 0.0
      %v396 = vadd.f32 %v332, %v387
      %v397 = vadd.f32 %v333, %v388
      %v398 = vadd.f32 %v334, %v389
      %v399 = vadd.f32 %v335, %v390
      %v400 = vadd.f32 %v336, %v391
      %v401 = vadd.f32 %v337, %v392
      %v402 = vadd.f32 %v338, %v390
      %v403 = vadd.f32 %v339, %v391
      %v404 = vadd.f32 %v340, %v392
      %v405 = vadd.f32 %v341, %v390
      %v406 = vadd.f32 %v342, %v391
      %v407 = vadd.f32 %v343, %v392
      %v408 = vadd.f32 %v344, %v390
      %v409 = vadd.f32 %v345, %v391
      %v410 = vadd.f32 %v346, %v392
      %v411 = vadd.f32 %v347, %v390
      %v412 = vadd.f32 %v348, %v391
      %v413 = vadd.f32 %v349, %v392
      %v414 = vadd.f32 %v350, %v390
      %v415 = vadd.f32 %v351, %v391
      %v416 = vadd.f32 %v352, %v392
      %v417 = vadd.f32 %v353, %v390
      %v418 = vadd.f32 %v354, %v391
      %v419 = vadd.f32 %v355, %v392
      %v420 = vadd.f32 %v356, %v390
      %v421 = vadd.f32 %v357, %v391
      %v422 = vadd.f32 %v358, %v392
      %v423 = vadd.f32 %v359, %v393
      %v424 = vadd.f32 %v360, %v394
      %v425 = vadd.f32 %v361, %v395
      %vm426 = vcmask 31744
      %427 = vst.msk [vmem:[#allocation2] sm:$0xff] %vm426, %v396
      %428 = vst.msk [vmem:[#allocation2 + $0x8] sm:$0xff] %vm426, %v397
      %429 = vst.msk [vmem:[#allocation2 + $0x10] sm:$0xff] %vm426, %v399
      %430 = vst.msk [vmem:[#allocation2 + $0x18] sm:$0xff] %vm426, %v400
      %431 = vst.msk [vmem:[#allocation2 + $0x20] sm:$0xff] %vm426, %v402
      %432 = vst.msk [vmem:[#allocation2 + $0x28] sm:$0xff] %vm426, %v403
      %433 = vst.msk [vmem:[#allocation2 + $0x30] sm:$0xff] %vm426, %v405
      %434 = vst.msk [vmem:[#allocation2 + $0x38] sm:$0xff] %vm426, %v406
      %435 = vst.msk [vmem:[#allocation2 + $0x40] sm:$0xff] %vm426, %v408
      %436 = vst.msk [vmem:[#allocation2 + $0x48] sm:$0xff] %vm426, %v409
      %437 = vst.msk [vmem:[#allocation2 + $0x50] sm:$0xff] %vm426, %v411
      %438 = vst.msk [vmem:[#allocation2 + $0x58] sm:$0xff] %vm426, %v412
      %439 = vst.msk [vmem:[#allocation2 + $0x60] sm:$0xff] %vm426, %v414
      %440 = vst.msk [vmem:[#allocation2 + $0x68] sm:$0xff] %vm426, %v415
      %441 = vst.msk [vmem:[#allocation2 + $0x70] sm:$0xff] %vm426, %v417
      %442 = vst.msk [vmem:[#allocation2 + $0x78] sm:$0xff] %vm426, %v418
      %vm467 = vcmask 1046528
      %v468 = vrot.slane %v396, 1
      %v469 = vrot.slane %v397, 1
      %v470 = vsel %vm467, %v468, %v469
      %v471 = vrot.slane %v398, 1
      %v472 = vsel %vm467, %v469, %v471
      %v473 = vrot.slane %v399, 1
      %v474 = vrot.slane %v400, 1
      %v475 = vsel %vm467, %v473, %v474
      %v476 = vrot.slane %v401, 1
      %v477 = vsel %vm467, %v474, %v476
      %v478 = vrot.slane %v402, 1
      %v479 = vrot.slane %v403, 1
      %v480 = vsel %vm467, %v478, %v479
      %v481 = vrot.slane %v404, 1
      %v482 = vsel %vm467, %v479, %v481
      %v483 = vrot.slane %v405, 1
      %v484 = vrot.slane %v406, 1
      %v485 = vsel %vm467, %v483, %v484
      %v486 = vrot.slane %v407, 1
      %v487 = vsel %vm467, %v484, %v486
      %v488 = vrot.slane %v408, 1
      %v489 = vrot.slane %v409, 1
      %v490 = vsel %vm467, %v488, %v489
      %v491 = vrot.slane %v410, 1
      %v492 = vsel %vm467, %v489, %v491
      %v493 = vrot.slane %v411, 1
      %v494 = vrot.slane %v412, 1
      %v495 = vsel %vm467, %v493, %v494
      %v496 = vrot.slane %v413, 1
      %v497 = vsel %vm467, %v494, %v496
      %v498 = vrot.slane %v414, 1
      %v499 = vrot.slane %v415, 1
      %v500 = vsel %vm467, %v498, %v499
      %v501 = vrot.slane %v416, 1
      %v502 = vsel %vm467, %v499, %v501
      %v503 = vrot.slane %v417, 1
      %v504 = vrot.slane %v418, 1
      %v505 = vsel %vm467, %v503, %v504
      %v506 = vrot.slane %v419, 1
      %v507 = vsel %vm467, %v504, %v506
      %508 = vrot.lane.b32.xlu0 %v470, 4
      %v509 = vpop.permute.xlu0 %508
      %510 = vrot.lane.b32.xlu0 %v472, 4
      %v511 = vpop.permute.xlu0 %510
      %512 = vrot.lane.b32.xlu0 %v475, 4
      %v513 = vpop.permute.xlu0 %512
      %514 = vrot.lane.b32.xlu0 %v477, 4
      %v515 = vpop.permute.xlu0 %514
      %516 = vrot.lane.b32.xlu0 %v480, 4
      %v517 = vpop.permute.xlu0 %516
      %518 = vrot.lane.b32.xlu0 %v482, 4
      %v519 = vpop.permute.xlu0 %518
      %520 = vrot.lane.b32.xlu0 %v485, 4
      %v521 = vpop.permute.xlu0 %520
      %522 = vrot.lane.b32.xlu0 %v487, 4
      %v523 = vpop.permute.xlu0 %522
      %524 = vrot.lane.b32.xlu0 %v490, 4
      %v525 = vpop.permute.xlu0 %524
      %526 = vrot.lane.b32.xlu0 %v492, 4
      %v527 = vpop.permute.xlu0 %526
      %528 = vrot.lane.b32.xlu0 %v495, 4
      %v529 = vpop.permute.xlu0 %528
      %530 = vrot.lane.b32.xlu0 %v497, 4
      %v531 = vpop.permute.xlu0 %530
      %532 = vrot.lane.b32.xlu0 %v500, 4
      %v533 = vpop.permute.xlu0 %532
      %534 = vrot.lane.b32.xlu0 %v502, 4
      %v535 = vpop.permute.xlu0 %534
      %536 = vrot.lane.b32.xlu0 %v505, 4
      %v537 = vpop.permute.xlu0 %536
      %538 = vrot.lane.b32.xlu0 %v507, 4
      %v539 = vpop.permute.xlu0 %538
      %vm556 = vcmask 64544
      %557 = vst.msk [vmem:[#allocation2] sm:$0xff] %vm556, %v509
      %558 = vst.msk [vmem:[#allocation2 + $0x8] sm:$0xff] %vm556, %v511
      %559 = vst.msk [vmem:[#allocation2 + $0x10] sm:$0xff] %vm556, %v513
      %560 = vst.msk [vmem:[#allocation2 + $0x18] sm:$0xff] %vm556, %v515
      %561 = vst.msk [vmem:[#allocation2 + $0x20] sm:$0xff] %vm556, %v517
      %562 = vst.msk [vmem:[#allocation2 + $0x28] sm:$0xff] %vm556, %v519
      %563 = vst.msk [vmem:[#allocation2 + $0x30] sm:$0xff] %vm556, %v521
      %564 = vst.msk [vmem:[#allocation2 + $0x38] sm:$0xff] %vm556, %v523
      %565 = vst.msk [vmem:[#allocation2 + $0x40] sm:$0xff] %vm556, %v525
      %566 = vst.msk [vmem:[#allocation2 + $0x48] sm:$0xff] %vm556, %v527
      %567 = vst.msk [vmem:[#allocation2 + $0x50] sm:$0xff] %vm556, %v529
      %568 = vst.msk [vmem:[#allocation2 + $0x58] sm:$0xff] %vm556, %v531
      %569 = vst.msk [vmem:[#allocation2 + $0x60] sm:$0xff] %vm556, %v533
      %570 = vst.msk [vmem:[#allocation2 + $0x68] sm:$0xff] %vm556, %v535
      %571 = vst.msk [vmem:[#allocation2 + $0x70] sm:$0xff] %vm556, %v537
      %572 = vst.msk [vmem:[#allocation2 + $0x78] sm:$0xff] %vm556, %v539
      %vm573 = vcmask 1045504
      %v574 = vrot.slane %v396, 2
      %v575 = vrot.slane %v397, 2
      %v576 = vsel %vm573, %v574, %v575
      %v577 = vrot.slane %v398, 2
      %v578 = vsel %vm573, %v575, %v577
      %v579 = vrot.slane %v399, 2
      %v580 = vrot.slane %v400, 2
      %v581 = vsel %vm573, %v579, %v580
      %v582 = vrot.slane %v401, 2
      %v583 = vsel %vm573, %v580, %v582
      %v584 = vrot.slane %v402, 2
      %v585 = vrot.slane %v403, 2
      %v586 = vsel %vm573, %v584, %v585
      %v587 = vrot.slane %v404, 2
      %v588 = vsel %vm573, %v585, %v587
      %v589 = vrot.slane %v405, 2
      %v590 = vrot.slane %v406, 2
      %v591 = vsel %vm573, %v589, %v590
      %v592 = vrot.slane %v407, 2
      %v593 = vsel %vm573, %v590, %v592
      %v594 = vrot.slane %v408, 2
      %v595 = vrot.slane %v409, 2
      %v596 = vsel %vm573, %v594, %v595
      %v597 = vrot.slane %v410, 2
      %v598 = vsel %vm573, %v595, %v597
      %v599 = vrot.slane %v411, 2
      %v600 = vrot.slane %v412, 2
      %v601 = vsel %vm573, %v599, %v600
      %v602 = vrot.slane %v413, 2
      %v603 = vsel %vm573, %v600, %v602
      %v604 = vrot.slane %v414, 2
      %v605 = vrot.slane %v415, 2
      %v606 = vsel %vm573, %v604, %v605
      %v607 = vrot.slane %v416, 2
      %v608 = vsel %vm573, %v605, %v607
      %v609 = vrot.slane %v417, 2
      %v610 = vrot.slane %v418, 2
      %v611 = vsel %vm573, %v609, %v610
      %v612 = vrot.slane %v419, 2
      %v613 = vsel %vm573, %v610, %v612
      %614 = vrot.lane.b32.xlu0 %v576, 8
      %v615 = vpop.permute.xlu0 %614
      %616 = vrot.lane.b32.xlu0 %v578, 8
      %v617 = vpop.permute.xlu0 %616
      %618 = vrot.lane.b32.xlu0 %v581, 8
      %v619 = vpop.permute.xlu0 %618
      %620 = vrot.lane.b32.xlu0 %v583, 8
      %v621 = vpop.permute.xlu0 %620
      %622 = vrot.lane.b32.xlu0 %v586, 8
      %v623 = vpop.permute.xlu0 %622
      %624 = vrot.lane.b32.xlu0 %v588, 8
      %v625 = vpop.permute.xlu0 %624
      %626 = vrot.lane.b32.xlu0 %v591, 8
      %v627 = vpop.permute.xlu0 %626
      %628 = vrot.lane.b32.xlu0 %v593, 8
      %v629 = vpop.permute.xlu0 %628
      %630 = vrot.lane.b32.xlu0 %v596, 8
      %v631 = vpop.permute.xlu0 %630
      %632 = vrot.lane.b32.xlu0 %v598, 8
      %v633 = vpop.permute.xlu0 %632
      %634 = vrot.lane.b32.xlu0 %v601, 8
      %v635 = vpop.permute.xlu0 %634
      %636 = vrot.lane.b32.xlu0 %v603, 8
      %v637 = vpop.permute.xlu0 %636
      %638 = vrot.lane.b32.xlu0 %v606, 8
      %v639 = vpop.permute.xlu0 %638
      %640 = vrot.lane.b32.xlu0 %v608, 8
      %v641 = vpop.permute.xlu0 %640
      %642 = vrot.lane.b32.xlu0 %v611, 8
      %v643 = vpop.permute.xlu0 %642
      %644 = vrot.lane.b32.xlu0 %v613, 8
      %v645 = vpop.permute.xlu0 %644
      %vm662 = vcmask 97344
      %663 = vst.msk [vmem:[#allocation2] sm:$0xff] %vm662, %v615
      %664 = vst.msk [vmem:[#allocation2 + $0x8] sm:$0xff] %vm662, %v617
      %665 = vst.msk [vmem:[#allocation2 + $0x10] sm:$0xff] %vm662, %v619
      %666 = vst.msk [vmem:[#allocation2 + $0x18] sm:$0xff] %vm662, %v621
      %667 = vst.msk [vmem:[#allocation2 + $0x20] sm:$0xff] %vm662, %v623
      %668 = vst.msk [vmem:[#allocation2 + $0x28] sm:$0xff] %vm662, %v625
      %669 = vst.msk [vmem:[#allocation2 + $0x30] sm:$0xff] %vm662, %v627
      %670 = vst.msk [vmem:[#allocation2 + $0x38] sm:$0xff] %vm662, %v629
      %671 = vst.msk [vmem:[#allocation2 + $0x40] sm:$0xff] %vm662, %v631
      %672 = vst.msk [vmem:[#allocation2 + $0x48] sm:$0xff] %vm662, %v633
      %673 = vst.msk [vmem:[#allocation2 + $0x50] sm:$0xff] %vm662, %v635
      %674 = vst.msk [vmem:[#allocation2 + $0x58] sm:$0xff] %vm662, %v637
      %675 = vst.msk [vmem:[#allocation2 + $0x60] sm:$0xff] %vm662, %v639
      %676 = vst.msk [vmem:[#allocation2 + $0x68] sm:$0xff] %vm662, %v641
      %677 = vst.msk [vmem:[#allocation2 + $0x70] sm:$0xff] %vm662, %v643
      %678 = vst.msk [vmem:[#allocation2 + $0x78] sm:$0xff] %vm662, %v645
      %681 = vrot.lane.b32.xlu0 %v399, 12
      %v682 = vpop.permute.xlu0 %681
      %683 = vrot.lane.b32.xlu0 %v400, 12
      %v684 = vpop.permute.xlu0 %683
      %685 = vrot.lane.b32.xlu0 %v402, 12
      %v686 = vpop.permute.xlu0 %685
      %687 = vrot.lane.b32.xlu0 %v403, 12
      %v688 = vpop.permute.xlu0 %687
      %689 = vrot.lane.b32.xlu0 %v405, 12
      %v690 = vpop.permute.xlu0 %689
      %691 = vrot.lane.b32.xlu0 %v406, 12
      %v692 = vpop.permute.xlu0 %691
      %693 = vrot.lane.b32.xlu0 %v408, 12
      %v694 = vpop.permute.xlu0 %693
      %695 = vrot.lane.b32.xlu0 %v409, 12
      %v696 = vpop.permute.xlu0 %695
      %697 = vrot.lane.b32.xlu0 %v411, 12
      %v698 = vpop.permute.xlu0 %697
      %699 = vrot.lane.b32.xlu0 %v412, 12
      %v700 = vpop.permute.xlu0 %699
      %701 = vrot.lane.b32.xlu0 %v414, 12
      %v702 = vpop.permute.xlu0 %701
      %703 = vrot.lane.b32.xlu0 %v415, 12
      %v704 = vpop.permute.xlu0 %703
      %705 = vrot.lane.b32.xlu0 %v417, 12
      %v706 = vpop.permute.xlu0 %705
      %707 = vrot.lane.b32.xlu0 %v418, 12
      %v708 = vpop.permute.xlu0 %707
      %709 = vrot.lane.b32.xlu0 %v420, 12
      %v710 = vpop.permute.xlu0 %709
      %711 = vrot.lane.b32.xlu0 %v421, 12
      %v712 = vpop.permute.xlu0 %711
      %vm729 = vcmask 130144
      %730 = vst.msk [vmem:[#allocation2] sm:$0xff] %vm729, %v682
      %731 = vst.msk [vmem:[#allocation2 + $0x8] sm:$0xff] %vm729, %v684
      %732 = vst.msk [vmem:[#allocation2 + $0x10] sm:$0xff] %vm729, %v686
      %733 = vst.msk [vmem:[#allocation2 + $0x18] sm:$0xff] %vm729, %v688
      %734 = vst.msk [vmem:[#allocation2 + $0x20] sm:$0xff] %vm729, %v690
      %735 = vst.msk [vmem:[#allocation2 + $0x28] sm:$0xff] %vm729, %v692
      %736 = vst.msk [vmem:[#allocation2 + $0x30] sm:$0xff] %vm729, %v694
      %737 = vst.msk [vmem:[#allocation2 + $0x38] sm:$0xff] %vm729, %v696
      %738 = vst.msk [vmem:[#allocation2 + $0x40] sm:$0xff] %vm729, %v698
      %739 = vst.msk [vmem:[#allocation2 + $0x48] sm:$0xff] %vm729, %v700
      %740 = vst.msk [vmem:[#allocation2 + $0x50] sm:$0xff] %vm729, %v702
      %741 = vst.msk [vmem:[#allocation2 + $0x58] sm:$0xff] %vm729, %v704
      %742 = vst.msk [vmem:[#allocation2 + $0x60] sm:$0xff] %vm729, %v706
      %743 = vst.msk [vmem:[#allocation2 + $0x68] sm:$0xff] %vm729, %v708
      %744 = vst.msk [vmem:[#allocation2 + $0x70] sm:$0xff] %vm729, %v710
      %745 = vst.msk [vmem:[#allocation2 + $0x78] sm:$0xff] %vm729, %v712
      %v747 = vrot.slane %v420, 1
      %v748 = vrot.slane %v421, 1
      %v749 = vsel %vm467, %v747, %v748
      %v750 = vrot.slane %v422, 1
      %v751 = vsel %vm467, %v748, %v750
      %752 = vrot.lane.b32.xlu0 %v475, 16
      %v753 = vpop.permute.xlu0 %752
      %754 = vrot.lane.b32.xlu0 %v477, 16
      %v755 = vpop.permute.xlu0 %754
      %756 = vrot.lane.b32.xlu0 %v480, 16
      %v757 = vpop.permute.xlu0 %756
      %758 = vrot.lane.b32.xlu0 %v482, 16
      %v759 = vpop.permute.xlu0 %758
      %760 = vrot.lane.b32.xlu0 %v485, 16
      %v761 = vpop.permute.xlu0 %760
      %762 = vrot.lane.b32.xlu0 %v487, 16
      %v763 = vpop.permute.xlu0 %762
      %764 = vrot.lane.b32.xlu0 %v490, 16
      %v765 = vpop.permute.xlu0 %764
      %766 = vrot.lane.b32.xlu0 %v492, 16
      %v767 = vpop.permute.xlu0 %766
      %768 = vrot.lane.b32.xlu0 %v495, 16
      %v769 = vpop.permute.xlu0 %768
      %770 = vrot.lane.b32.xlu0 %v497, 16
      %v771 = vpop.permute.xlu0 %770
      %772 = vrot.lane.b32.xlu0 %v500, 16
      %v773 = vpop.permute.xlu0 %772
      %774 = vrot.lane.b32.xlu0 %v502, 16
      %v775 = vpop.permute.xlu0 %774
      %776 = vrot.lane.b32.xlu0 %v505, 16
      %v777 = vpop.permute.xlu0 %776
      %778 = vrot.lane.b32.xlu0 %v507, 16
      %v779 = vpop.permute.xlu0 %778
      %780 = vrot.lane.b32.xlu0 %v749, 16
      %v781 = vpop.permute.xlu0 %780
      %782 = vrot.lane.b32.xlu0 %v751, 16
      %v783 = vpop.permute.xlu0 %782
      %vm800 = vcmask 162944
      %801 = vst.msk [vmem:[#allocation2] sm:$0xff] %vm800, %v753
      %802 = vst.msk [vmem:[#allocation2 + $0x8] sm:$0xff] %vm800, %v755
      %803 = vst.msk [vmem:[#allocation2 + $0x10] sm:$0xff] %vm800, %v757
      %804 = vst.msk [vmem:[#allocation2 + $0x18] sm:$0xff] %vm800, %v759
      %805 = vst.msk [vmem:[#allocation2 + $0x20] sm:$0xff] %vm800, %v761
      %806 = vst.msk [vmem:[#allocation2 + $0x28] sm:$0xff] %vm800, %v763
      %807 = vst.msk [vmem:[#allocation2 + $0x30] sm:$0xff] %vm800, %v765
      %808 = vst.msk [vmem:[#allocation2 + $0x38] sm:$0xff] %vm800, %v767
      %809 = vst.msk [vmem:[#allocation2 + $0x40] sm:$0xff] %vm800, %v769
      %810 = vst.msk [vmem:[#allocation2 + $0x48] sm:$0xff] %vm800, %v771
      %811 = vst.msk [vmem:[#allocation2 + $0x50] sm:$0xff] %vm800, %v773
      %812 = vst.msk [vmem:[#allocation2 + $0x58] sm:$0xff] %vm800, %v775
      %813 = vst.msk [vmem:[#allocation2 + $0x60] sm:$0xff] %vm800, %v777
      %814 = vst.msk [vmem:[#allocation2 + $0x68] sm:$0xff] %vm800, %v779
      %815 = vst.msk [vmem:[#allocation2 + $0x70] sm:$0xff] %vm800, %v781
      %816 = vst.msk [vmem:[#allocation2 + $0x78] sm:$0xff] %vm800, %v783
      %v817 = vrot.slane %v420, 2
      %v818 = vrot.slane %v421, 2
      %v819 = vsel %vm573, %v817, %v818
      %v820 = vrot.slane %v422, 2
      %v821 = vsel %vm573, %v818, %v820
      %822 = vrot.lane.b32.xlu0 %v581, 20
      %v823 = vpop.permute.xlu0 %822
      %824 = vrot.lane.b32.xlu0 %v583, 20
      %v825 = vpop.permute.xlu0 %824
      %826 = vrot.lane.b32.xlu0 %v586, 20
      %v827 = vpop.permute.xlu0 %826
      %828 = vrot.lane.b32.xlu0 %v588, 20
      %v829 = vpop.permute.xlu0 %828
      %830 = vrot.lane.b32.xlu0 %v591, 20
      %v831 = vpop.permute.xlu0 %830
      %832 = vrot.lane.b32.xlu0 %v593, 20
      %v833 = vpop.permute.xlu0 %832
      %834 = vrot.lane.b32.xlu0 %v596, 20
      %v835 = vpop.permute.xlu0 %834
      %836 = vrot.lane.b32.xlu0 %v598, 20
      %v837 = vpop.permute.xlu0 %836
      %838 = vrot.lane.b32.xlu0 %v601, 20
      %v839 = vpop.permute.xlu0 %838
      %840 = vrot.lane.b32.xlu0 %v603, 20
      %v841 = vpop.permute.xlu0 %840
      %842 = vrot.lane.b32.xlu0 %v606, 20
      %v843 = vpop.permute.xlu0 %842
      %844 = vrot.lane.b32.xlu0 %v608, 20
      %v845 = vpop.permute.xlu0 %844
      %846 = vrot.lane.b32.xlu0 %v611, 20
      %v847 = vpop.permute.xlu0 %846
      %848 = vrot.lane.b32.xlu0 %v613, 20
      %v849 = vpop.permute.xlu0 %848
      %850 = vrot.lane.b32.xlu0 %v819, 20
      %v851 = vpop.permute.xlu0 %850
      %852 = vrot.lane.b32.xlu0 %v821, 20
      %v853 = vpop.permute.xlu0 %852
      %vm870 = vcmask 195744
      %871 = vst.msk [vmem:[#allocation2] sm:$0xff] %vm870, %v823
      %872 = vst.msk [vmem:[#allocation2 + $0x8] sm:$0xff] %vm870, %v825
      %873 = vst.msk [vmem:[#allocation2 + $0x10] sm:$0xff] %vm870, %v827
      %874 = vst.msk [vmem:[#allocation2 + $0x18] sm:$0xff] %vm870, %v829
      %875 = vst.msk [vmem:[#allocation2 + $0x20] sm:$0xff] %vm870, %v831
      %876 = vst.msk [vmem:[#allocation2 + $0x28] sm:$0xff] %vm870, %v833
      %877 = vst.msk [vmem:[#allocation2 + $0x30] sm:$0xff] %vm870, %v835
      %878 = vst.msk [vmem:[#allocation2 + $0x38] sm:$0xff] %vm870, %v837
      %879 = vst.msk [vmem:[#allocation2 + $0x40] sm:$0xff] %vm870, %v839
      %880 = vst.msk [vmem:[#allocation2 + $0x48] sm:$0xff] %vm870, %v841
      %881 = vst.msk [vmem:[#allocation2 + $0x50] sm:$0xff] %vm870, %v843
      %882 = vst.msk [vmem:[#allocation2 + $0x58] sm:$0xff] %vm870, %v845
      %883 = vst.msk [vmem:[#allocation2 + $0x60] sm:$0xff] %vm870, %v847
      %884 = vst.msk [vmem:[#allocation2 + $0x68] sm:$0xff] %vm870, %v849
      %885 = vst.msk [vmem:[#allocation2 + $0x70] sm:$0xff] %vm870, %v851
      %886 = vst.msk [vmem:[#allocation2 + $0x78] sm:$0xff] %vm870, %v853
      %889 = vrot.lane.b32.xlu0 %v402, 24
      %v890 = vpop.permute.xlu0 %889
      %891 = vrot.lane.b32.xlu0 %v403, 24
      %v892 = vpop.permute.xlu0 %891
      %893 = vrot.lane.b32.xlu0 %v405, 24
      %v894 = vpop.permute.xlu0 %893
      %895 = vrot.lane.b32.xlu0 %v406, 24
      %v896 = vpop.permute.xlu0 %895
      %897 = vrot.lane.b32.xlu0 %v408, 24
      %v898 = vpop.permute.xlu0 %897
      %899 = vrot.lane.b32.xlu0 %v409, 24
      %v900 = vpop.permute.xlu0 %899
      %901 = vrot.lane.b32.xlu0 %v411, 24
      %v902 = vpop.permute.xlu0 %901
      %903 = vrot.lane.b32.xlu0 %v412, 24
      %v904 = vpop.permute.xlu0 %903
      %905 = vrot.lane.b32.xlu0 %v414, 24
      %v906 = vpop.permute.xlu0 %905
      %907 = vrot.lane.b32.xlu0 %v415, 24
      %v908 = vpop.permute.xlu0 %907
      %909 = vrot.lane.b32.xlu0 %v417, 24
      %v910 = vpop.permute.xlu0 %909
      %911 = vrot.lane.b32.xlu0 %v418, 24
      %v912 = vpop.permute.xlu0 %911
      %913 = vrot.lane.b32.xlu0 %v420, 24
      %v914 = vpop.permute.xlu0 %913
      %915 = vrot.lane.b32.xlu0 %v421, 24
      %v916 = vpop.permute.xlu0 %915
      %917 = vrot.lane.b32.xlu0 %v423, 24
      %v918 = vpop.permute.xlu0 %917
      %919 = vrot.lane.b32.xlu0 %v424, 24
      %v920 = vpop.permute.xlu0 %919
      %vm937 = vcmask 228544
      %938 = vst.msk [vmem:[#allocation2] sm:$0xff] %vm937, %v890
      %939 = vst.msk [vmem:[#allocation2 + $0x8] sm:$0xff] %vm937, %v892
      %940 = vst.msk [vmem:[#allocation2 + $0x10] sm:$0xff] %vm937, %v894
      %941 = vst.msk [vmem:[#allocation2 + $0x18] sm:$0xff] %vm937, %v896
      %942 = vst.msk [vmem:[#allocation2 + $0x20] sm:$0xff] %vm937, %v898
      %943 = vst.msk [vmem:[#allocation2 + $0x28] sm:$0xff] %vm937, %v900
      %944 = vst.msk [vmem:[#allocation2 + $0x30] sm:$0xff] %vm937, %v902
      %945 = vst.msk [vmem:[#allocation2 + $0x38] sm:$0xff] %vm937, %v904
      %946 = vst.msk [vmem:[#allocation2 + $0x40] sm:$0xff] %vm937, %v906
      %947 = vst.msk [vmem:[#allocation2 + $0x48] sm:$0xff] %vm937, %v908
      %948 = vst.msk [vmem:[#allocation2 + $0x50] sm:$0xff] %vm937, %v910
      %949 = vst.msk [vmem:[#allocation2 + $0x58] sm:$0xff] %vm937, %v912
      %950 = vst.msk [vmem:[#allocation2 + $0x60] sm:$0xff] %vm937, %v914
      %951 = vst.msk [vmem:[#allocation2 + $0x68] sm:$0xff] %vm937, %v916
      %952 = vst.msk [vmem:[#allocation2 + $0x70] sm:$0xff] %vm937, %v918
      %953 = vst.msk [vmem:[#allocation2 + $0x78] sm:$0xff] %vm937, %v920
      %v955 = vrot.slane %v423, 1
      %v956 = vrot.slane %v424, 1
      %v957 = vsel %vm467, %v955, %v956
      %v958 = vrot.slane %v425, 1
      %v959 = vsel %vm467, %v956, %v958
      %960 = vrot.lane.b32.xlu0 %v480, 28
      %v961 = vpop.permute.xlu0 %960
      %962 = vrot.lane.b32.xlu0 %v482, 28
      %v963 = vpop.permute.xlu0 %962
      %964 = vrot.lane.b32.xlu0 %v485, 28
      %v965 = vpop.permute.xlu0 %964
      %966 = vrot.lane.b32.xlu0 %v487, 28
      %v967 = vpop.permute.xlu0 %966
      %968 = vrot.lane.b32.xlu0 %v490, 28
      %v969 = vpop.permute.xlu0 %968
      %970 = vrot.lane.b32.xlu0 %v492, 28
      %v971 = vpop.permute.xlu0 %970
      %972 = vrot.lane.b32.xlu0 %v495, 28
      %v973 = vpop.permute.xlu0 %972
      %974 = vrot.lane.b32.xlu0 %v497, 28
      %v975 = vpop.permute.xlu0 %974
      %976 = vrot.lane.b32.xlu0 %v500, 28
      %v977 = vpop.permute.xlu0 %976
      %978 = vrot.lane.b32.xlu0 %v502, 28
      %v979 = vpop.permute.xlu0 %978
      %980 = vrot.lane.b32.xlu0 %v505, 28
      %v981 = vpop.permute.xlu0 %980
      %982 = vrot.lane.b32.xlu0 %v507, 28
      %v983 = vpop.permute.xlu0 %982
      %984 = vrot.lane.b32.xlu0 %v749, 28
      %v985 = vpop.permute.xlu0 %984
      %986 = vrot.lane.b32.xlu0 %v751, 28
      %v987 = vpop.permute.xlu0 %986
      %988 = vrot.lane.b32.xlu0 %v957, 28
      %v989 = vpop.permute.xlu0 %988
      %990 = vrot.lane.b32.xlu0 %v959, 28
      %v991 = vpop.permute.xlu0 %990
      %vm1008 = vcmask 261344
      %1009 = vst.msk [vmem:[#allocation2] sm:$0xff] %vm1008, %v961
      %1010 = vst.msk [vmem:[#allocation2 + $0x8] sm:$0xff] %vm1008, %v963
      %1011 = vst.msk [vmem:[#allocation2 + $0x10] sm:$0xff] %vm1008, %v965
      %1012 = vst.msk [vmem:[#allocation2 + $0x18] sm:$0xff] %vm1008, %v967
      %1013 = vst.msk [vmem:[#allocation2 + $0x20] sm:$0xff] %vm1008, %v969
      %1014 = vst.msk [vmem:[#allocation2 + $0x28] sm:$0xff] %vm1008, %v971
      %1015 = vst.msk [vmem:[#allocation2 + $0x30] sm:$0xff] %vm1008, %v973
      %1016 = vst.msk [vmem:[#allocation2 + $0x38] sm:$0xff] %vm1008, %v975
      %1017 = vst.msk [vmem:[#allocation2 + $0x40] sm:$0xff] %vm1008, %v977
      %1018 = vst.msk [vmem:[#allocation2 + $0x48] sm:$0xff] %vm1008, %v979
      %1019 = vst.msk [vmem:[#allocation2 + $0x50] sm:$0xff] %vm1008, %v981
      %1020 = vst.msk [vmem:[#allocation2 + $0x58] sm:$0xff] %vm1008, %v983
      %1021 = vst.msk [vmem:[#allocation2 + $0x60] sm:$0xff] %vm1008, %v985
      %1022 = vst.msk [vmem:[#allocation2 + $0x68] sm:$0xff] %vm1008, %v987
      %1023 = vst.msk [vmem:[#allocation2 + $0x70] sm:$0xff] %vm1008, %v989
      %1024 = vst.msk [vmem:[#allocation2 + $0x78] sm:$0xff] %vm1008, %v991
      %v1025 = vrot.slane %v423, 2
      %v1026 = vrot.slane %v424, 2
      %v1027 = vsel %vm573, %v1025, %v1026
      %v1028 = vrot.slane %v425, 2
      %v1029 = vsel %vm573, %v1026, %v1028
      %1030 = vrot.lane.b32.xlu0 %v586, 32
      %v1031 = vpop.permute.xlu0 %1030
      %1032 = vrot.lane.b32.xlu0 %v588, 32
      %v1033 = vpop.permute.xlu0 %1032
      %1034 = vrot.lane.b32.xlu0 %v591, 32
      %v1035 = vpop.permute.xlu0 %1034
      %1036 = vrot.lane.b32.xlu0 %v593, 32
      %v1037 = vpop.permute.xlu0 %1036
      %1038 = vrot.lane.b32.xlu0 %v596, 32
      %v1039 = vpop.permute.xlu0 %1038
      %1040 = vrot.lane.b32.xlu0 %v598, 32
      %v1041 = vpop.permute.xlu0 %1040
      %1042 = vrot.lane.b32.xlu0 %v601, 32
      %v1043 = vpop.permute.xlu0 %1042
      %1044 = vrot.lane.b32.xlu0 %v603, 32
      %v1045 = vpop.permute.xlu0 %1044
      %1046 = vrot.lane.b32.xlu0 %v606, 32
      %v1047 = vpop.permute.xlu0 %1046
      %1048 = vrot.lane.b32.xlu0 %v608, 32
      %v1049 = vpop.permute.xlu0 %1048
      %1050 = vrot.lane.b32.xlu0 %v611, 32
      %v1051 = vpop.permute.xlu0 %1050
      %1052 = vrot.lane.b32.xlu0 %v613, 32
      %v1053 = vpop.permute.xlu0 %1052
      %1054 = vrot.lane.b32.xlu0 %v819, 32
      %v1055 = vpop.permute.xlu0 %1054
      %1056 = vrot.lane.b32.xlu0 %v821, 32
      %v1057 = vpop.permute.xlu0 %1056
      %1058 = vrot.lane.b32.xlu0 %v1027, 32
      %v1059 = vpop.permute.xlu0 %1058
      %1060 = vrot.lane.b32.xlu0 %v1029, 32
      %v1061 = vpop.permute.xlu0 %1060
      %vm1078 = vcmask 294144
      %1079 = vst.msk [vmem:[#allocation2] sm:$0xff] %vm1078, %v1031
      %1080 = vst.msk [vmem:[#allocation2 + $0x8] sm:$0xff] %vm1078, %v1033
      %1081 = vst.msk [vmem:[#allocation2 + $0x10] sm:$0xff] %vm1078, %v1035
      %1082 = vst.msk [vmem:[#allocation2 + $0x18] sm:$0xff] %vm1078, %v1037
      %1083 = vst.msk [vmem:[#allocation2 + $0x20] sm:$0xff] %vm1078, %v1039
      %1084 = vst.msk [vmem:[#allocation2 + $0x28] sm:$0xff] %vm1078, %v1041
      %1085 = vst.msk [vmem:[#allocation2 + $0x30] sm:$0xff] %vm1078, %v1043
      %1086 = vst.msk [vmem:[#allocation2 + $0x38] sm:$0xff] %vm1078, %v1045
      %1087 = vst.msk [vmem:[#allocation2 + $0x40] sm:$0xff] %vm1078, %v1047
      %1088 = vst.msk [vmem:[#allocation2 + $0x48] sm:$0xff] %vm1078, %v1049
      %1089 = vst.msk [vmem:[#allocation2 + $0x50] sm:$0xff] %vm1078, %v1051
      %1090 = vst.msk [vmem:[#allocation2 + $0x58] sm:$0xff] %vm1078, %v1053
      %1091 = vst.msk [vmem:[#allocation2 + $0x60] sm:$0xff] %vm1078, %v1055
      %1092 = vst.msk [vmem:[#allocation2 + $0x68] sm:$0xff] %vm1078, %v1057
      %1093 = vst.msk [vmem:[#allocation2 + $0x70] sm:$0xff] %vm1078, %v1059
      %1094 = vst.msk [vmem:[#allocation2 + $0x78] sm:$0xff] %vm1078, %v1061
      %v1095 = vld [vmem:[#allocation2] sm:$0xff]
      %v1096 = vld [vmem:[#allocation2 + $0x8] sm:$0xff]
      %v1097 = vld [vmem:[#allocation2 + $0x10] sm:$0xff]
      %v1098 = vld [vmem:[#allocation2 + $0x18] sm:$0xff]
      %v1099 = vld [vmem:[#allocation2 + $0x20] sm:$0xff]
      %v1100 = vld [vmem:[#allocation2 + $0x28] sm:$0xff]
      %v1101 = vld [vmem:[#allocation2 + $0x30] sm:$0xff]
      %v1102 = vld [vmem:[#allocation2 + $0x38] sm:$0xff]
      %v1103 = vld [vmem:[#allocation2 + $0x40] sm:$0xff]
      %v1104 = vld [vmem:[#allocation2 + $0x48] sm:$0xff]
      %v1105 = vld [vmem:[#allocation2 + $0x50] sm:$0xff]
      %v1106 = vld [vmem:[#allocation2 + $0x58] sm:$0xff]
      %v1107 = vld [vmem:[#allocation2 + $0x60] sm:$0xff]
      %v1108 = vld [vmem:[#allocation2 + $0x68] sm:$0xff]
      %v1109 = vld [vmem:[#allocation2 + $0x70] sm:$0xff]
      %v1110 = vld [vmem:[#allocation2 + $0x78] sm:$0xff]
      %v1111 = vpack.c.bf16 %v1096, %v1095
      %v1112 = vpack.c.bf16 %v1098, %v1097
      %v1113 = vpack.c.bf16 %v1100, %v1099
      %v1114 = vpack.c.bf16 %v1102, %v1101
      %v1115 = vpack.c.bf16 %v1104, %v1103
      %v1116 = vpack.c.bf16 %v1106, %v1105
      %v1117 = vpack.c.bf16 %v1108, %v1107
      %v1118 = vpack.c.bf16 %v1110, %v1109
      %v1119 = vld [vmem:[%s3] sm:$0xf]
      %v1120 = vld [vmem:[%s3 + $0x4] sm:$0xf]
      %v1121 = vld [vmem:[%s3 + $0x8] sm:$0xf]
      %v1122 = vld [vmem:[%s3 + $0xc] sm:$0xf]
      %v1123 = vld [vmem:[%s3 + $0x10] sm:$0x3]
      %v1124 = vld [vmem:[%s4] sm:$0x1]
      %v1126 = vlaneseq
      %v1127 = vshrl.u32 %v1126, 7
      %v1128 = vsub.s32 0, %v1127
      %v1129 = vrot.slane %v1124, %v1128
      %v1136 = vunpack.c.l.b16 %v1119
      %v1137 = vunpack.c.l.b16 %v1120
      %v1138 = vunpack.c.l.b16 %v1121
      %v1139 = vunpack.c.l.b16 %v1122
      %v1140 = vunpack.c.l.b16 %v1123
      %v1141 = vpack.c.b16 %v1137, %v1136
      %v1142 = vpack.c.b16 %v1139, %v1138
      %v1143 = vpack.c.b16 %v1140, %v1140
      %vm1146 = vcmask 293888
      %v1148 = vsel %vm1146, %v1111, 0
      %v1151 = vsel %vm1146, %v1112, 0
      %v1154 = vsel %vm1146, %v1113, 0
      %v1157 = vsel %vm1146, %v1114, 0
      %v1160 = vsel %vm1146, %v1115, 0
      %v1163 = vsel %vm1146, %v1116, 0
      %v1166 = vsel %vm1146, %v1117, 0
      %v1169 = vsel %vm1146, %v1118, 0
      %vm1171 = vcmask 1041408
      %v1173 = vsel %vm1171, %v1143, 0
      %1175 = vmatprep.subr.bf16.mxu0 0
      %1176 = vmatpush1.bf16.msra.mxu0 0
      %1177 = vmatprep.subr.bf16.mxu0 0
      %1178 = vmatpush1.bf16.msra.mxu0 0
      %1179 = vmatprep.subr.bf16.mxu0 0
      %1180 = vmatpush1.bf16.msra.mxu0 0
      %1181 = vmatprep.subr.bf16.mxu0 0
      %1182 = vmatpush1.bf16.msra.mxu0 0
      %1183 = vmatprep.subr.bf16.mxu0 0
      %1184 = vmatpush1.bf16.msra.mxu0 0
      %1185 = vmatprep.subr.bf16.mxu0 0
      %1186 = vmatpush1.bf16.msra.mxu0 %v1173
      %1187 = vmatprep.subr.bf16.mxu0 0
      %1188 = vmatpush1.bf16.msra.mxu0 %v1142
      %1189 = vmatprep.subr.bf16.mxu0 0
      %1190 = vmatpush1.bf16.msra.mxu0 %v1141
      %1191 = vmatprep.subr.bf16.mxu0 0
      %1192 = vmatpush2.bf16.msra.mxu0 0
      %1193 = vmatprep.subr.bf16.mxu0 0
      %1194 = vmatpush2.bf16.msra.mxu0 0
      %1195 = vmatprep.subr.bf16.mxu0 0
      %1196 = vmatpush2.bf16.msra.mxu0 0
      %1197 = vmatprep.subr.bf16.mxu0 0
      %1198 = vmatpush2.bf16.msra.mxu0 0
      %1199 = vmatprep.subr.bf16.mxu0 0
      %1200 = vmatpush2.bf16.msra.mxu0 0
      %1201 = vmatprep.subr.bf16.mxu0 0
      %1202 = vmatpush2.bf16.msra.mxu0 0
      %1203 = vmatprep.subr.bf16.mxu0 0
      %1204 = vmatpush2.bf16.msra.mxu0 0
      %1205 = vmatprep.subr.bf16.mxu0 0
      %1206 = vmatpush2.bf16.msra.mxu0 0
      %1207 = vmatprep.mubr.bf16.mxu0 0
      %1208 = vmatmul.mubr.bf16.gmra.mxu0 %v1148
      %v1209 = vpop.f32.mrf.mxu0
      %v1210 = vadd.f32 %v1129, %v1209
      %v1211 = vpop.f32.mrf.mxu0
      %v1212 = vpop.f32.mrf.mxu0
      %v1213 = vadd.f32 %v1129, %v1212
      %v1214 = vpop.f32.mrf.mxu0
      %1215 = vmatprep.mubr.bf16.mxu0 0
      %1216 = vmatmul.mubr.bf16.gmra.mxu0 %v1151
      %v1217 = vpop.f32.mrf.mxu0
      %v1218 = vadd.f32 %v1129, %v1217
      %v1219 = vpop.f32.mrf.mxu0
      %v1220 = vpop.f32.mrf.mxu0
      %v1221 = vadd.f32 %v1129, %v1220
      %v1222 = vpop.f32.mrf.mxu0
      %1223 = vmatprep.mubr.bf16.mxu0 0
      %1224 = vmatmul.mubr.bf16.gmra.mxu0 %v1154
      %v1225 = vpop.f32.mrf.mxu0
      %v1226 = vadd.f32 %v1129, %v1225
      %v1227 = vpop.f32.mrf.mxu0
      %v1228 = vpop.f32.mrf.mxu0
      %v1229 = vadd.f32 %v1129, %v1228
      %v1230 = vpop.f32.mrf.mxu0
      %1231 = vmatprep.mubr.bf16.mxu0 0
      %1232 = vmatmul.mubr.bf16.gmra.mxu0 %v1157
      %v1233 = vpop.f32.mrf.mxu0
      %v1234 = vadd.f32 %v1129, %v1233
      %v1235 = vpop.f32.mrf.mxu0
      %v1236 = vpop.f32.mrf.mxu0
      %v1237 = vadd.f32 %v1129, %v1236
      %v1238 = vpop.f32.mrf.mxu0
      %1239 = vmatprep.mubr.bf16.mxu0 0
      %1240 = vmatmul.mubr.bf16.gmra.mxu0 %v1160
      %v1241 = vpop.f32.mrf.mxu0
      %v1242 = vadd.f32 %v1129, %v1241
      %v1243 = vpop.f32.mrf.mxu0
      %v1244 = vpop.f32.mrf.mxu0
      %v1245 = vadd.f32 %v1129, %v1244
      %v1246 = vpop.f32.mrf.mxu0
      %1247 = vmatprep.mubr.bf16.mxu0 0
      %1248 = vmatmul.mubr.bf16.gmra.mxu0 %v1163
      %v1249 = vpop.f32.mrf.mxu0
      %v1250 = vadd.f32 %v1129, %v1249
      %v1251 = vpop.f32.mrf.mxu0
      %v1252 = vpop.f32.mrf.mxu0
      %v1253 = vadd.f32 %v1129, %v1252
      %v1254 = vpop.f32.mrf.mxu0
      %1255 = vmatprep.mubr.bf16.mxu0 0
      %1256 = vmatmul.mubr.bf16.gmra.mxu0 %v1166
      %v1257 = vpop.f32.mrf.mxu0
      %v1258 = vadd.f32 %v1129, %v1257
      %v1259 = vpop.f32.mrf.mxu0
      %v1260 = vpop.f32.mrf.mxu0
      %v1261 = vadd.f32 %v1129, %v1260
      %v1262 = vpop.f32.mrf.mxu0
      %1263 = vmatprep.mubr.bf16.mxu0 0
      %1264 = vmatmul.mubr.bf16.gmra.mxu0 %v1169
      %v1265 = vpop.f32.mrf.mxu0
      %v1266 = vadd.f32 %v1129, %v1265
      %v1267 = vpop.f32.mrf.mxu0
      %v1268 = vpop.f32.mrf.mxu0
      %v1269 = vadd.f32 %v1129, %v1268
      %v1270 = vpop.f32.mrf.mxu0
      %1271 = vdwg.mxu0
      %v1272 = vmax.f32 %v1210, 0.0
      %v1273 = vmax.f32 %v1213, 0.0
      %v1274 = vmax.f32 %v1218, 0.0
      %v1275 = vmax.f32 %v1221, 0.0
      %v1276 = vmax.f32 %v1226, 0.0
      %v1277 = vmax.f32 %v1229, 0.0
      %v1278 = vmax.f32 %v1234, 0.0
      %v1279 = vmax.f32 %v1237, 0.0
      %v1280 = vmax.f32 %v1242, 0.0
      %v1281 = vmax.f32 %v1245, 0.0
      %v1282 = vmax.f32 %v1250, 0.0
      %v1283 = vmax.f32 %v1253, 0.0
      %v1284 = vmax.f32 %v1258, 0.0
      %v1285 = vmax.f32 %v1261, 0.0
      %v1286 = vmax.f32 %v1266, 0.0
      %v1287 = vmax.f32 %v1269, 0.0
      %vm1288 = vcmask 64512
      %1289 = vst.msk [vmem:[%s260] sm:$0xff] %vm1288, %v1272
      %1290 = vst.msk [vmem:[%s260 + $0x8] sm:$0xff] %vm1288, %v1273
      %1291 = vst.msk [vmem:[%s260 + $0x10] sm:$0xff] %vm1288, %v1274
      %1292 = vst.msk [vmem:[%s260 + $0x18] sm:$0xff] %vm1288, %v1275
      %1293 = vst.msk [vmem:[%s260 + $0x20] sm:$0xff] %vm1288, %v1276
      %1294 = vst.msk [vmem:[%s260 + $0x28] sm:$0xff] %vm1288, %v1277
      %1295 = vst.msk [vmem:[%s260 + $0x30] sm:$0xff] %vm1288, %v1278
      %1296 = vst.msk [vmem:[%s260 + $0x38] sm:$0xff] %vm1288, %v1279
      %1297 = vst.msk [vmem:[%s260 + $0x40] sm:$0xff] %vm1288, %v1280
      %1298 = vst.msk [vmem:[%s260 + $0x48] sm:$0xff] %vm1288, %v1281
      %1299 = vst.msk [vmem:[%s260 + $0x50] sm:$0xff] %vm1288, %v1282
      %1300 = vst.msk [vmem:[%s260 + $0x58] sm:$0xff] %vm1288, %v1283
      %1301 = vst.msk [vmem:[%s260 + $0x60] sm:$0xff] %vm1288, %v1284
      %1302 = vst.msk [vmem:[%s260 + $0x68] sm:$0xff] %vm1288, %v1285
      %1303 = vst.msk [vmem:[%s260 + $0x70] sm:$0xff] %vm1288, %v1286
      %1304 = vst.msk [vmem:[%s260 + $0x78] sm:$0xff] %vm1288, %v1287
      %p1305 = scmp.lt.s32.totalorder %s20, 1
      %s1306 = scalar_select %p1305, %s20, 1
      %p1307 = scmp.lt.s32.totalorder %s21, 1
      %s1308 = scalar_select %p1307, %s21, 1
      %s1309 = smul.addr %s1308, 16
      %s1310 = smul.addr %s1306, 32
      %s1311 = sadd.s32 %s1309, %s1310
      %s1312 = smul.addr %s1311, 8
      %s1313 = scalar_lea.vmem %s5, %s1312
      // Predicated region
      $region41: #{bn_relu_3x3.1} parent=39 // pred_check
        %p1314 = pneg %p160
      $region42: #{bn_relu_3x3.1} parent=39 // pred_check_branch
        %1316 = sbr.rel (%p1314) target = $region44
      $region43: #{bn_relu_3x3.1} parent=39 // pred_region
        _
      $region44: #{bn_relu_3x3.1} parent=39 // pred_fallthru
        _
    $region40: #{bn_relu_3x3.1} parent=5 // pred_fallthru
      _
    %p1317 = scmp.le.s32.totalorder 2, %s11
    // Predicated region
    $region45: #{bn_relu_3x3.1} parent=5 // pred_check
      %p1318 = pneg %p1317
    $region46: #{bn_relu_3x3.1} parent=5 // pred_check_branch
      %1320 = sbr.rel (%p1318) target = $region48
    $region47: #{bn_relu_3x3.1} parent=5 // pred_region
      %s1321 = ssub.s32 %s11, 2
      // Predicated region
      $region49: #{bn_relu_3x3.1} parent=47 // pred_check
        %p1322 = pneg %p166
      $region50: #{bn_relu_3x3.1} parent=47 // pred_check_branch
        %1324 = sbr.rel (%p1322) target = $region52
      $region51: #{bn_relu_3x3.1} parent=47 // pred_region
        %p1325 = scmp.lt.s32.totalorder %s22, 1
        %s1326 = scalar_select %p1325, %s22, 1
        %p1327 = scmp.lt.s32.totalorder %s23, 1
        %s1328 = scalar_select %p1327, %s23, 1
        %s1329 = smul.addr %s1328, 16
        %s1330 = smul.addr %s1326, 32
        %s1331 = sadd.s32 %s1329, %s1330
        %s1332 = smul.addr %s1331, 8
        %s1333 = scalar_lea.vmem %s5, %s1332
      $region52: #{bn_relu_3x3.1} parent=47 // pred_fallthru
        _
    $region48: #{bn_relu_3x3.1} parent=5 // pred_fallthru
      _
  $region6: #{bn_relu_3x3.1} parent=0 // loop_footer
    %s15 = sadd.s32 1, %s11
  $region7: #{bn_relu_3x3.1} parent=0 // loop_footer_branch
    %10 = sbr.rel target = $region3
  $region8: #{bn_relu_3x3.1} parent=0 // loop_exit
    _

</llo_original>
